<compile_context>
chip_gen: v7x
topology: tpu7x:2x2x1
jax: 0.10.0
libtpu: 0.0.40
codegen_flags: <defaults>
</compile_context>

<pallas_src>
import functools
import math

import jax
import jax.numpy as jnp
import numpy as np
from jax.experimental import pallas as pl
from jax.experimental.pallas import tpu as pltpu

LANE = 128


def _round_up(x, m):
    return ((x + m - 1) // m) * m


def _pad2(a, rows, cols):
    a = a.astype(jnp.float32)
    return jnp.pad(a, ((0, rows - a.shape[0]), (0, cols - a.shape[1])))


# ----------------------------------------------------------------------------
# Kernel A: layer 1 (+ fused layer-2 transform)
#   acc  = sum_k Â[i,k] @ X[k]                 (aggregate first: F_in <= D1)
#   H1   = mask * relu(acc @ W1 + b1)          (mask = precomputed inverted dropout)
#   G    = H1 @ W2                             (layer-2 transform, D2 <= D1)
# ----------------------------------------------------------------------------
def _layer1_kernel(a_ref, x_ref, w1_ref, b1_ref, w2_ref, mask_ref,
                   g_ref, acc_ref, *, tk):
    # program ids read once, at the top of the body (never inside pl.when).
    k = pl.program_id(1)
    nk = pl.num_programs(1)

    @pl.when(k == 0)
    def _():
        acc_ref[...] = jnp.zeros_like(acc_ref)

    # X is fully resident in VMEM; slice the k-th row panel.
    x_blk = x_ref[pl.ds(k * tk, tk), :]
    acc_ref[...] += jnp.dot(a_ref[...], x_blk,
                            preferred_element_type=jnp.float32)

    @pl.when(k == nk - 1)
    def _():
        h1 = jnp.dot(acc_ref[...].astype(jnp.bfloat16), w1_ref[...],
                     preferred_element_type=jnp.float32) + b1_ref[...]
        h1 = jnp.maximum(h1, 0.0)
        h1 = h1 * mask_ref[...].astype(jnp.float32)      # inverted dropout
        g_ref[...] = jnp.dot(h1.astype(jnp.bfloat16), w2_ref[...],
                             preferred_element_type=jnp.float32
                             ).astype(g_ref.dtype)


# ----------------------------------------------------------------------------
# Kernel B: layer 2 aggregation   H2[i] = sum_k Â[i,k] @ G[k]  + b2
# ----------------------------------------------------------------------------
def _layer2_kernel(a_ref, g_ref, b2_ref, out_ref, acc_ref, *, tk):
    k = pl.program_id(1)
    nk = pl.num_programs(1)

    @pl.when(k == 0)
    def _():
        acc_ref[...] = jnp.zeros_like(acc_ref)

    g_blk = g_ref[pl.ds(k * tk, tk), :]                  # G resident in VMEM
    acc_ref[...] += jnp.dot(a_ref[...], g_blk,
                            preferred_element_type=jnp.float32)

    @pl.when(k == nk - 1)
    def _():
        out_ref[...] = acc_ref[...] + b2_ref[...]


# ----------------------------------------------------------------------------
# Wrapper
# ----------------------------------------------------------------------------
def gcn_forward(a_hat, x, w1, b1, w2, b2, *, dropout_p=0.2, rng_key=None,
                tm=256, tk=512):
    """Returns (H2[:N, :D2], dropout_mask[:N, :D1])."""
    N = x.shape[0]
    f_in, d1 = w1.shape
    d2 = w2.shape[1]

    # Large Â tiles (memory-bound kernels); clamp so small problems collapse to
    # a single grid step per layer (zero pipeline overhead at demo size).
    n128 = _round_up(N, LANE)
    tm = min(tm, n128)
    tk = min(tk, n128)
    n_pad = _round_up(N, math.lcm(tm, tk))
    f_pad = _round_up(f_in, LANE)
    d1_pad = _round_up(d1, LANE)
    d2_pad = _round_up(d2, LANE)

    # bf16 MXU operands; accumulation and epilogue stay f32.
    a_p = _pad2(a_hat, n_pad, n_pad).astype(jnp.bfloat16)
    x_p = _pad2(x, n_pad, f_pad).astype(jnp.bfloat16)
    w1_p = _pad2(w1, f_pad, d1_pad).astype(jnp.bfloat16)
    w2_p = _pad2(w2, d1_pad, d2_pad).astype(jnp.bfloat16)
    b1_p = _pad2(b1.reshape(1, d1), 1, d1_pad)
    b2_p = _pad2(b2.reshape(1, d2), 1, d2_pad)

    # Inverted-dropout mask built outside the kernel (exact values {0, 1/(1-p)}).
    if dropout_p > 0.0:
        if rng_key is None:
            rng_key = jax.random.PRNGKey(0)
        keep = jax.random.bernoulli(rng_key, p=1.0 - dropout_p,
                                    shape=(n_pad, d1_pad))
        mask = keep.astype(jnp.float32) * jnp.float32(1.0 / (1.0 - dropout_p))
    else:
        mask = jnp.ones((n_pad, d1_pad), jnp.float32)
    mask_bf = mask.astype(jnp.bfloat16)   # bf16 stream (1.25 is exact in bf16)

    grid = (n_pad // tm, n_pad // tk)
    cparams = pltpu.CompilerParams(
        dimension_semantics=("parallel", "arbitrary"),   # rows across TCs on v7x
        vmem_limit_bytes=32 * 1024 * 1024)               # safe on v5e/v6e/v7x

    # ---------------- layer 1 (+ fused H1·W2) ----------------
    g_bf = pl.pallas_call(
        functools.partial(_layer1_kernel, tk=tk),
        out_shape=jax.ShapeDtypeStruct((n_pad, d2_pad), jnp.bfloat16),
        grid_spec=pltpu.PrefetchScalarGridSpec(
            num_scalar_prefetch=0,
            grid=grid,
            in_specs=[
                pl.BlockSpec((tm, tk), lambda i, k: (i, k)),           # Â tile
                pl.BlockSpec((n_pad, f_pad), lambda i, k: (0, 0)),     # X resident
                pl.BlockSpec((f_pad, d1_pad), lambda i, k: (0, 0)),    # W1
                pl.BlockSpec((1, d1_pad), lambda i, k: (0, 0)),        # b1
                pl.BlockSpec((d1_pad, d2_pad), lambda i, k: (0, 0)),   # W2
                pl.BlockSpec((tm, d1_pad), lambda i, k: (i, 0)),       # dropout mask
            ],
            out_specs=pl.BlockSpec((tm, d2_pad), lambda i, k: (i, 0)), # G = H1·W2
            scratch_shapes=[pltpu.VMEM((tm, f_pad), jnp.float32)],
        ),
        compiler_params=cparams,
    )(a_p, x_p, w1_p, b1_p, w2_p, mask_bf)

    # ---------------- layer 2 aggregation ----------------
    out_pad = pl.pallas_call(
        functools.partial(_layer2_kernel, tk=tk),
        out_shape=jax.ShapeDtypeStruct((n_pad, d2_pad), jnp.float32),
        grid_spec=pltpu.PrefetchScalarGridSpec(
            num_scalar_prefetch=0,
            grid=grid,
            in_specs=[
                pl.BlockSpec((tm, tk), lambda i, k: (i, k)),           # Â tile
                pl.BlockSpec((n_pad, d2_pad), lambda i, k: (0, 0)),    # G resident
                pl.BlockSpec((1, d2_pad), lambda i, k: (0, 0)),        # b2
            ],
            out_specs=pl.BlockSpec((tm, d2_pad), lambda i, k: (i, 0)),
            scratch_shapes=[pltpu.VMEM((tm, d2_pad), jnp.float32)],
        ),
        compiler_params=cparams,
    )(a_p, g_bf, b2_p)

    return out_pad[:N, :d2], mask[:N, :d1]


# ----------------------------------------------------------------------------
# Plain-JAX glue: normalized adjacency + deterministic parameter init.
# ----------------------------------------------------------------------------
def build_norm_adj(edge_index, num_nodes):
    """PyG GCNConv gcn_norm semantics: add self-loops, symmetric normalization."""
    src, dst = edge_index[0], edge_index[1]
    A = jnp.zeros((num_nodes, num_nodes), jnp.float32)
    A = A.at[dst, src].add(1.0)                      # messages src -> dst
    A = A + jnp.eye(num_nodes, dtype=jnp.float32)    # self-loops
    deg = A.sum(axis=1)
    dinv = jnp.where(deg > 0.0, jax.lax.rsqrt(deg), 0.0)
    return dinv[:, None] * A * dinv[None, :]


def glorot_uniform(key, fan_in, fan_out):
    limit = np.sqrt(6.0 / (fan_in + fan_out))
    return jax.random.uniform(key, (fan_in, fan_out), jnp.float32, -limit, limit)


if __name__ == "__main__":
    # Small-but-tileable shapes consistent with the module.
    N, IN_DIM = 256, 8
    OUT_DIMS = {"out_dim1": 32, "out_dim2": 16}
    E = 1024
    DROPOUT_P = 0.2

    key = jax.random.PRNGKey(0)
    kx, ke1, ke2, kw1, kw2, kdrop = jax.random.split(key, 6)

    x = jax.random.normal(kx, (N, IN_DIM), jnp.float32)
    edge_index = jnp.stack([
        jax.random.randint(ke1, (E,), 0, N),
        jax.random.randint(ke2, (E,), 0, N),
    ]).astype(jnp.int32)                              # [2, E]

    # GCNConv: glorot weights, zero bias.
    w1 = glorot_uniform(kw1, IN_DIM, OUT_DIMS["out_dim1"])
    b1 = jnp.zeros((OUT_DIMS["out_dim1"],), jnp.float32)
    w2 = glorot_uniform(kw2, OUT_DIMS["out_dim1"], OUT_DIMS["out_dim2"])
    b2 = jnp.zeros((OUT_DIMS["out_dim2"],), jnp.float32)

    a_hat = build_norm_adj(edge_index, N)

    out, mask = gcn_forward(a_hat, x, w1, b1, w2, b2,
                            dropout_p=DROPOUT_P, rng_key=kdrop)
    out = jax.block_until_ready(out)
    mask = jax.block_until_ready(mask)

    # Mask sanity: values are exactly {0, 1/(1-p)}.
    mvals = set(np.round(np.unique(np.asarray(mask)), 6).tolist())
    assert mvals.issubset({0.0, round(1.0 / (1.0 - DROPOUT_P), 6)}), mvals

    # Pure-JAX reference reproducing the kernel's bf16 rounding points.
    hp = jax.lax.Precision.HIGHEST
    bf = lambda t: t.astype(jnp.bfloat16).astype(jnp.float32)
    a_bf, x_bf, w1_bf, w2_bf = bf(a_hat), bf(x), bf(w1), bf(w2)
    agg = bf(jnp.dot(a_bf, x_bf, precision=hp))                       # Â·X (acc -> bf16)
    h1 = jnp.maximum(jnp.dot(agg, w1_bf, precision=hp) + b1[None, :], 0.0)
    h1 = h1 * mask                                                    # same mask as kernel
    g = bf(jnp.dot(bf(h1), w2_bf, precision=hp))                      # H1·W2 (bf16 out)
    out_ref = jnp.dot(a_bf, g, precision=hp) + b2[None, :]            # Â·G + b2

    np.testing.assert_allclose(np.asarray(out), np.asarray(out_ref),
                               rtol=2e-2, atol=2e-2)

    print("KERNEL_OK")
</pallas_src>

<mosaic_0001>
module attributes {stable_mosaic.version = 11 : i64} {
  func.func @_layer1_kernel(%arg0: i32, %arg1: i32, %arg2: memref<256x256xbf16, #tpu.memory_space<vmem>>, %arg3: memref<256x128xbf16, #tpu.memory_space<vmem>>, %arg4: memref<128x128xbf16, #tpu.memory_space<vmem>>, %arg5: memref<1x128xf32, #tpu.memory_space<vmem>>, %arg6: memref<128x128xbf16, #tpu.memory_space<vmem>>, %arg7: memref<256x128xbf16, #tpu.memory_space<vmem>>, %arg8: memref<256x128xbf16, #tpu.memory_space<vmem>>, %arg9: memref<256x128xf32, #tpu.memory_space<vmem>>) attributes {dimension_semantics = [#tpu.dimension_semantics<parallel>, #tpu.dimension_semantics<arbitrary>], iteration_bounds = array<i64: 1, 1>, scalar_prefetch = 0 : i64, scratch_operands = 1 : i64, tpu.core_type = #tpu.core_type<tc>, window_params = [{transform_indices = @transform_0, window_bounds = array<i64: 256, 256>}, {pipeline_mode = #tpu.pipeline_mode<synchronous>, transform_indices = @transform_1, window_bounds = array<i64: 256, 128>}, {pipeline_mode = #tpu.pipeline_mode<synchronous>, transform_indices = @transform_2, window_bounds = array<i64: 128, 128>}, {pipeline_mode = #tpu.pipeline_mode<synchronous>, transform_indices = @transform_3, window_bounds = array<i64: 1, 128>}, {pipeline_mode = #tpu.pipeline_mode<synchronous>, transform_indices = @transform_4, window_bounds = array<i64: 128, 128>}, {transform_indices = @transform_5, window_bounds = array<i64: 256, 128>}, {transform_indices = @transform_6, window_bounds = array<i64: 256, 128>}]} {
    %c0_i32 = arith.constant 0 : i32
    %0 = arith.cmpi eq, %arg1, %c0_i32 : i32
    %1 = arith.extui %0 : i1 to i32
    %c0_i32_0 = arith.constant 0 : i32
    %2 = arith.cmpi ne, %1, %c0_i32_0 : i32
    scf.if %2 {
      %cst_9 = arith.constant 0.000000e+00 : f32
      %14 = vector.broadcast %cst_9 : f32 to vector<256x128xf32>
      %c0_10 = arith.constant 0 : index
      %c0_11 = arith.constant 0 : index
      %15 = vector.load %arg9[%c0_10, %c0_11] : memref<256x128xf32, #tpu.memory_space<vmem>>, vector<256x128xf32>
      tpu.vector_store %arg9[%c0_10, %c0_11], %14 {strides = array<i32>} : memref<256x128xf32, #tpu.memory_space<vmem>>, vector<256x128xf32>,
    } else {
    }
    %c256_i32 = arith.constant 256 : i32
    %3 = arith.muli %arg1, %c256_i32 : i32
    %4 = arith.index_cast %3 : i32 to index
    %c0 = arith.constant 0 : index
    %5 = vector.load %arg3[%4, %c0] : memref<256x128xbf16, #tpu.memory_space<vmem>>, vector<256x128xbf16>
    %c0_1 = arith.constant 0 : index
    %c0_2 = arith.constant 0 : index
    %6 = vector.load %arg9[%c0_1, %c0_2] : memref<256x128xf32, #tpu.memory_space<vmem>>, vector<256x128xf32>
    %c0_3 = arith.constant 0 : index
    %c0_4 = arith.constant 0 : index
    %7 = vector.load %arg2[%c0_3, %c0_4] : memref<256x256xbf16, #tpu.memory_space<vmem>>, vector<256x256xbf16>
    %cst = arith.constant dense<0.000000e+00> : vector<256x128xf32>
    %8 = tpu.matmul %7, %5, %cst {dimension_numbers = #tpu.dot_dimension_numbers<[1], [0], [0], [1], [0, 0, 1, 1], [], []>} : vector<256x256xbf16>, vector<256x128xbf16>, vector<256x128xf32> -> vector<256x128xf32>
    %9 = arith.addf %6, %8 : vector<256x128xf32>
    %c0_5 = arith.constant 0 : index
    %c0_6 = arith.constant 0 : index
    %10 = vector.load %arg9[%c0_5, %c0_6] : memref<256x128xf32, #tpu.memory_space<vmem>>, vector<256x128xf32>
    tpu.vector_store %arg9[%c0_5, %c0_6], %9 {strides = array<i32>} : memref<256x128xf32, #tpu.memory_space<vmem>>, vector<256x128xf32>,
    %c0_i32_7 = arith.constant 0 : i32
    %11 = arith.cmpi eq, %arg1, %c0_i32_7 : i32
    %12 = arith.extui %11 : i1 to i32
    %c0_i32_8 = arith.constant 0 : i32
    %13 = arith.cmpi ne, %12, %c0_i32_8 : i32
    scf.if %13 {
      %c0_9 = arith.constant 0 : index
      %c0_10 = arith.constant 0 : index
      %14 = vector.load %arg9[%c0_9, %c0_10] : memref<256x128xf32, #tpu.memory_space<vmem>>, vector<256x128xf32>
      %15 = arith.truncf %14 : vector<256x128xf32> to vector<256x128xbf16>
      %c0_11 = arith.constant 0 : index
      %c0_12 = arith.constant 0 : index
      %16 = vector.load %arg4[%c0_11, %c0_12] : memref<128x128xbf16, #tpu.memory_space<vmem>>, vector<128x128xbf16>
      %cst_13 = arith.constant dense<0.000000e+00> : vector<256x128xf32>
      %17 = tpu.matmul %15, %16, %cst_13 {dimension_numbers = #tpu.dot_dimension_numbers<[1], [0], [0], [1], [0, 0, 1, 1], [], []>} : vector<256x128xbf16>, vector<128x128xbf16>, vector<256x128xf32> -> vector<256x128xf32>
      %c0_14 = arith.constant 0 : index
      %c0_15 = arith.constant 0 : index
      %18 = vector.load %arg5[%c0_14, %c0_15] : memref<1x128xf32, #tpu.memory_space<vmem>>, vector<1x128xf32>
      %19 = vector.broadcast %18 : vector<1x128xf32> to vector<256x128xf32>
      %20 = arith.addf %17, %19 : vector<256x128xf32>
      %cst_16 = arith.constant 0.000000e+00 : f32
      %21 = vector.broadcast %cst_16 : f32 to vector<256x128xf32>
      %22 = arith.maximumf %20, %21 : vector<256x128xf32>
      %c0_17 = arith.constant 0 : index
      %c0_18 = arith.constant 0 : index
      %23 = vector.load %arg7[%c0_17, %c0_18] : memref<256x128xbf16, #tpu.memory_space<vmem>>, vector<256x128xbf16>
      %24 = arith.extf %23 : vector<256x128xbf16> to vector<256x128xf32>
      %25 = arith.mulf %22, %24 : vector<256x128xf32>
      %26 = arith.truncf %25 : vector<256x128xf32> to vector<256x128xbf16>
      %c0_19 = arith.constant 0 : index
      %c0_20 = arith.constant 0 : index
      %27 = vector.load %arg6[%c0_19, %c0_20] : memref<128x128xbf16, #tpu.memory_space<vmem>>, vector<128x128xbf16>
      %cst_21 = arith.constant dense<0.000000e+00> : vector<256x128xf32>
      %28 = tpu.matmul %26, %27, %cst_21 {dimension_numbers = #tpu.dot_dimension_numbers<[1], [0], [0], [1], [0, 0, 1, 1], [], []>} : vector<256x128xbf16>, vector<128x128xbf16>, vector<256x128xf32> -> vector<256x128xf32>
      %29 = arith.truncf %28 : vector<256x128xf32> to vector<256x128xbf16>
      %c0_22 = arith.constant 0 : index
      %c0_23 = arith.constant 0 : index
      %30 = vector.load %arg8[%c0_22, %c0_23] : memref<256x128xbf16, #tpu.memory_space<vmem>>, vector<256x128xbf16>
      tpu.vector_store %arg8[%c0_22, %c0_23], %29 {strides = array<i32>} : memref<256x128xbf16, #tpu.memory_space<vmem>>, vector<256x128xbf16>,
    } else {
    }
    return
  }
  func.func @transform_0(%arg0: i32, %arg1: i32) -> (i32, i32) {
    %c0_i32 = arith.constant 0 : i32
    return %arg0, %arg1 : i32, i32
  }
  func.func @transform_1(%arg0: i32, %arg1: i32) -> (i32, i32) {
    %c0_i32 = arith.constant 0 : i32
    %c0_i32_0 = arith.constant 0 : i32
    %c0_i32_1 = arith.constant 0 : i32
    return %c0_i32, %c0_i32_0 : i32, i32
  }
  func.func @transform_2(%arg0: i32, %arg1: i32) -> (i32, i32) {
    %c0_i32 = arith.constant 0 : i32
    %c0_i32_0 = arith.constant 0 : i32
    %c0_i32_1 = arith.constant 0 : i32
    return %c0_i32, %c0_i32_0 : i32, i32
  }
  func.func @transform_3(%arg0: i32, %arg1: i32) -> (i32, i32) {
    %c0_i32 = arith.constant 0 : i32
    %c0_i32_0 = arith.constant 0 : i32
    %c0_i32_1 = arith.constant 0 : i32
    return %c0_i32, %c0_i32_0 : i32, i32
  }
  func.func @transform_4(%arg0: i32, %arg1: i32) -> (i32, i32) {
    %c0_i32 = arith.constant 0 : i32
    %c0_i32_0 = arith.constant 0 : i32
    %c0_i32_1 = arith.constant 0 : i32
    return %c0_i32, %c0_i32_0 : i32, i32
  }
  func.func @transform_5(%arg0: i32, %arg1: i32) -> (i32, i32) {
    %c0_i32 = arith.constant 0 : i32
    %c0_i32_0 = arith.constant 0 : i32
    return %arg0, %c0_i32 : i32, i32
  }
  func.func @transform_6(%arg0: i32, %arg1: i32) -> (i32, i32) {
    %c0_i32 = arith.constant 0 : i32
    %c0_i32_0 = arith.constant 0 : i32
    return %arg0, %c0_i32 : i32, i32
  }
}

</mosaic_0001>

<llo_original>
// kernel: tpu_custom_call.1
$region0: #{tpu_custom_call.1}
  #allocation0 [shape = 'u32[]', space=smem, size = 0x4, offset = 0x4, fixed_abs, tag = 'smem constant byte address 0x4 - core index']
  #allocation1 [shape = 'u32[144,128]{1,0:T(1,128)}', space=vmem, size = 0x12000, scoped, tag = 'internal scratch']
  #allocation2 [shape = 'f32[256,128]{1,0:T(8,128)}', space=vmem, size = 0x20000, scoped, tag = 'scratch operand']
  %s0 = inlined_call_operand.hbm [shape: bf16[256,256], index: 0, kind: input, shape index: {}]
  %s1 = inlined_call_operand.hbm [shape: bf16[256,128], index: 1, kind: input, shape index: {}]
  %s2 = inlined_call_operand.hbm [shape: bf16[128,128], index: 2, kind: input, shape index: {}]
  %s3 = inlined_call_operand.vmem [shape: f32[1,128], index: 3, kind: input, shape index: {}]
  %s4 = inlined_call_operand.hbm [shape: bf16[128,128], index: 4, kind: input, shape index: {}]
  %s5 = inlined_call_operand.hbm [shape: bf16[256,128], index: 5, kind: input, shape index: {}]
  %s6 = inlined_call_operand.hbm [shape: bf16[256,128], index: 6, kind: output, shape index: {}]
  %s7 = sld [smem:[#allocation0]]
  $region62: #{tpu_custom_call.1} parent=0
    _
  %s9 = ssub.s32 1, %s7
  %s10 = scalar_select 0, %s9, %s7
  $region1: #{tpu_custom_call.1} parent=0
    #allocation3 [shape = 'u8[131072]{0}', space=vmem, size = 0x20000, scoped, tag = 'input window, operand 0, single buffered']
    #allocation4 [shape = 's32[1]{0}', space=sflag, size = 0x4, scoped, tag = 'scoped memory for tpu_custom_call.1']
    #allocation5 [shape = 's32[1]{0}', space=sflag, size = 0x4, scoped, tag = 'scoped memory for tpu_custom_call.1']
    #allocation6 [shape = 'u8[65536]{0}', space=vmem, size = 0x10000, scoped, tag = 'input window, operand 1, single buffered']
    #allocation7 [shape = 's32[1]{0}', space=sflag, size = 0x4, scoped, tag = 'scoped memory for tpu_custom_call.1']
    #allocation8 [shape = 'u8[32768]{0}', space=vmem, size = 0x8000, scoped, tag = 'input window, operand 2, single buffered']
    #allocation9 [shape = 'u8[32768]{0}', space=vmem, size = 0x8000, scoped, tag = 'input window, operand 4, single buffered']
    #allocation10 [shape = 's32[1]{0}', space=sflag, size = 0x4, scoped, tag = 'scoped memory for tpu_custom_call.1']
    #allocation11 [shape = 'u8[65536]{0}', space=vmem, size = 0x10000, scoped, tag = 'input window, operand 5, single buffered']
    #allocation12 [shape = 'u8[65536]{0}', space=vmem, size = 0x10000, scoped, tag = 'output window, operand 0, single buffered']
    %11 = vsyncpa [#allocation4], 0
    %12 = vsyncpa [#allocation7], 0
    %13 = vsyncpa [#allocation10], 0
    %14 = vsyncpa [#allocation5], 0
    // Predicated region
    $region2: #{tpu_custom_call.1} parent=1 // pred_check
      _
    $region3: #{tpu_custom_call.1} parent=1 // pred_check_branch
      %16 = sbr.rel (0) target = $region5
    $region4: #{tpu_custom_call.1} parent=1 // pred_region
      %s18 = ssub.s32 4096, 4096
      %19 = vsyncadd [#allocation4], %s18
      %s20 = sshll.u32 [#allocation3], 4
      %s21 = int_to_ptr.vmem [resolvable:$true] %s20
      %26 = dma.hbm_to_vmem [thread:$0]  %s0, 4096, %s21, [#allocation4], 128, 128, 8
    $region5: #{tpu_custom_call.1} parent=1 // pred_fallthru
      _
    // Predicated region
    $region6: #{tpu_custom_call.1} parent=1 // pred_check
      _
    $region7: #{tpu_custom_call.1} parent=1 // pred_check_branch
      %28 = sbr.rel (0) target = $region9
    $region8: #{tpu_custom_call.1} parent=1 // pred_region
      %s30 = ssub.s32 2048, 2048
      %31 = vsyncadd [#allocation7], %s30
      %s32 = sshll.u32 [#allocation6], 4
      %s33 = int_to_ptr.vmem [resolvable:$true] %s32
      %38 = dma.hbm_to_vmem [thread:$0]  %s1, 2048, %s33, [#allocation7], 64, 64, 4
    $region9: #{tpu_custom_call.1} parent=1 // pred_fallthru
      _
    // Predicated region
    $region10: #{tpu_custom_call.1} parent=1 // pred_check
      _
    $region11: #{tpu_custom_call.1} parent=1 // pred_check_branch
      %40 = sbr.rel (0) target = $region13
    $region12: #{tpu_custom_call.1} parent=1 // pred_region
      %s42 = ssub.s32 1024, 1024
      %43 = vsyncadd [#allocation7], %s42
      %s44 = sshll.u32 [#allocation8], 4
      %s45 = int_to_ptr.vmem [resolvable:$true] %s44
      %50 = dma.hbm_to_vmem [thread:$0]  %s2, 1024, %s45, [#allocation7], 64, 64, 4
    $region13: #{tpu_custom_call.1} parent=1 // pred_fallthru
      _
    // Predicated region
    $region14: #{tpu_custom_call.1} parent=1 // pred_check
      _
    $region15: #{tpu_custom_call.1} parent=1 // pred_check_branch
      %52 = sbr.rel (0) target = $region17
    $region16: #{tpu_custom_call.1} parent=1 // pred_region
      _
    $region17: #{tpu_custom_call.1} parent=1 // pred_fallthru
      _
    // Predicated region
    $region18: #{tpu_custom_call.1} parent=1 // pred_check
      _
    $region19: #{tpu_custom_call.1} parent=1 // pred_check_branch
      %54 = sbr.rel (0) target = $region21
    $region20: #{tpu_custom_call.1} parent=1 // pred_region
      %s56 = ssub.s32 1024, 1024
      %57 = vsyncadd [#allocation10], %s56
      %s58 = sshll.u32 [#allocation9], 4
      %s59 = int_to_ptr.vmem [resolvable:$true] %s58
      %64 = dma.hbm_to_vmem [thread:$0]  %s4, 1024, %s59, [#allocation10], 64, 64, 4
    $region21: #{tpu_custom_call.1} parent=1 // pred_fallthru
      _
    // Predicated region
    $region22: #{tpu_custom_call.1} parent=1 // pred_check
      _
    $region23: #{tpu_custom_call.1} parent=1 // pred_check_branch
      %66 = sbr.rel (0) target = $region25
    $region24: #{tpu_custom_call.1} parent=1 // pred_region
      %s68 = ssub.s32 2048, 2048
      %69 = vsyncadd [#allocation10], %s68
      %s70 = sshll.u32 [#allocation11], 4
      %s71 = int_to_ptr.vmem [resolvable:$true] %s70
      %76 = dma.hbm_to_vmem [thread:$0]  %s5, 2048, %s71, [#allocation10], 64, 64, 4
    $region25: #{tpu_custom_call.1} parent=1 // pred_fallthru
      _
    // Predicated region
    $region26: #{tpu_custom_call.1} parent=1 // pred_check
      _
    $region27: #{tpu_custom_call.1} parent=1 // pred_check_branch
      %78 = sbr.rel (0) target = $region29
    $region28: #{tpu_custom_call.1} parent=1 // pred_region
      %79 = dma.done [#allocation4], 4096
    $region29: #{tpu_custom_call.1} parent=1 // pred_fallthru
      _
    // Predicated region
    $region30: #{tpu_custom_call.1} parent=1 // pred_check
      _
    $region31: #{tpu_custom_call.1} parent=1 // pred_check_branch
      %81 = sbr.rel (0) target = $region33
    $region32: #{tpu_custom_call.1} parent=1 // pred_region
      %82 = dma.done [#allocation7], 2048
    $region33: #{tpu_custom_call.1} parent=1 // pred_fallthru
      _
    // Predicated region
    $region34: #{tpu_custom_call.1} parent=1 // pred_check
      _
    $region35: #{tpu_custom_call.1} parent=1 // pred_check_branch
      %84 = sbr.rel (0) target = $region37
    $region36: #{tpu_custom_call.1} parent=1 // pred_region
      %85 = dma.done [#allocation7], 1024
    $region37: #{tpu_custom_call.1} parent=1 // pred_fallthru
      _
    // Predicated region
    $region38: #{tpu_custom_call.1} parent=1 // pred_check
      _
    $region39: #{tpu_custom_call.1} parent=1 // pred_check_branch
      %87 = sbr.rel (0) target = $region41
    $region40: #{tpu_custom_call.1} parent=1 // pred_region
      %88 = dma.done [#allocation10], 1024
    $region41: #{tpu_custom_call.1} parent=1 // pred_fallthru
      _
    // Predicated region
    $region42: #{tpu_custom_call.1} parent=1 // pred_check
      _
    $region43: #{tpu_custom_call.1} parent=1 // pred_check_branch
      %90 = sbr.rel (0) target = $region45
    $region44: #{tpu_custom_call.1} parent=1 // pred_region
      %91 = dma.done [#allocation10], 2048
    $region45: #{tpu_custom_call.1} parent=1 // pred_fallthru
      _
    %p93 = scmp.eq.s32.totalorder 0, 0
    // Predicated region
    $region46: #{tpu_custom_call.1} parent=1 // pred_check
      %p94 = pneg %p93
    $region47: #{tpu_custom_call.1} parent=1 // pred_check_branch
      %96 = sbr.rel (%p94) target = $region49
    $region48: #{tpu_custom_call.1} parent=1 // pred_region
      %97 = vst [vmem:[#allocation2] sm:$0xff] 0.0
      %98 = vst [vmem:[#allocation2 + $0x8] sm:$0xff] 0.0
      %99 = vst [vmem:[#allocation2 + $0x10] sm:$0xff] 0.0
      %100 = vst [vmem:[#allocation2 + $0x18] sm:$0xff] 0.0
      %101 = vst [vmem:[#allocation2 + $0x20] sm:$0xff] 0.0
      %102 = vst [vmem:[#allocation2 + $0x28] sm:$0xff] 0.0
      %103 = vst [vmem:[#allocation2 + $0x30] sm:$0xff] 0.0
      %104 = vst [vmem:[#allocation2 + $0x38] sm:$0xff] 0.0
      %105 = vst [vmem:[#allocation2 + $0x40] sm:$0xff] 0.0
      %106 = vst [vmem:[#allocation2 + $0x48] sm:$0xff] 0.0
      %107 = vst [vmem:[#allocation2 + $0x50] sm:$0xff] 0.0
      %108 = vst [vmem:[#allocation2 + $0x58] sm:$0xff] 0.0
      %109 = vst [vmem:[#allocation2 + $0x60] sm:$0xff] 0.0
      %110 = vst [vmem:[#allocation2 + $0x68] sm:$0xff] 0.0
      %111 = vst [vmem:[#allocation2 + $0x70] sm:$0xff] 0.0
      %112 = vst [vmem:[#allocation2 + $0x78] sm:$0xff] 0.0
      %113 = vst [vmem:[#allocation2 + $0x80] sm:$0xff] 0.0
      %114 = vst [vmem:[#allocation2 + $0x88] sm:$0xff] 0.0
      %115 = vst [vmem:[#allocation2 + $0x90] sm:$0xff] 0.0
      %116 = vst [vmem:[#allocation2 + $0x98] sm:$0xff] 0.0
      %117 = vst [vmem:[#allocation2 + $0xa0] sm:$0xff] 0.0
      %118 = vst [vmem:[#allocation2 + $0xa8] sm:$0xff] 0.0
      %119 = vst [vmem:[#allocation2 + $0xb0] sm:$0xff] 0.0
      %120 = vst [vmem:[#allocation2 + $0xb8] sm:$0xff] 0.0
      %121 = vst [vmem:[#allocation2 + $0xc0] sm:$0xff] 0.0
      %122 = vst [vmem:[#allocation2 + $0xc8] sm:$0xff] 0.0
      %123 = vst [vmem:[#allocation2 + $0xd0] sm:$0xff] 0.0
      %124 = vst [vmem:[#allocation2 + $0xd8] sm:$0xff] 0.0
      %125 = vst [vmem:[#allocation2 + $0xe0] sm:$0xff] 0.0
      %126 = vst [vmem:[#allocation2 + $0xe8] sm:$0xff] 0.0
      %127 = vst [vmem:[#allocation2 + $0xf0] sm:$0xff] 0.0
      %128 = vst [vmem:[#allocation2 + $0xf8] sm:$0xff] 0.0
    $region49: #{tpu_custom_call.1} parent=1 // pred_fallthru
      _
    %s129 = smul.u32 0, 256
    %s130 = sshra.s32 %s129, 3
    %s131 = sand.u32 %s129, 7
    %s132 = smul.addr %s130, 4
    %s133 = scalar_lea.vmem [#allocation6], %s132
    %v134 = vld [vmem:[%s133] sm:$0xf]
    %v135 = vld [vmem:[%s133 + $0x4] sm:$0xf]
    %v136 = vld [vmem:[%s133 + $0x8] sm:$0xf]
    %v137 = vld [vmem:[%s133 + $0xc] sm:$0xf]
    %v138 = vld [vmem:[%s133 + $0x10] sm:$0xf]
    %v139 = vld [vmem:[%s133 + $0x14] sm:$0xf]
    %v140 = vld [vmem:[%s133 + $0x18] sm:$0xf]
    %v141 = vld [vmem:[%s133 + $0x1c] sm:$0xf]
    %v142 = vld [vmem:[%s133 + $0x20] sm:$0xf]
    %v143 = vld [vmem:[%s133 + $0x24] sm:$0xf]
    %v144 = vld [vmem:[%s133 + $0x28] sm:$0xf]
    %v145 = vld [vmem:[%s133 + $0x2c] sm:$0xf]
    %v146 = vld [vmem:[%s133 + $0x30] sm:$0xf]
    %v147 = vld [vmem:[%s133 + $0x34] sm:$0xf]
    %v148 = vld [vmem:[%s133 + $0x38] sm:$0xf]
    %v149 = vld [vmem:[%s133 + $0x3c] sm:$0xf]
    %v150 = vld [vmem:[%s133 + $0x40] sm:$0xf]
    %v151 = vld [vmem:[%s133 + $0x44] sm:$0xf]
    %v152 = vld [vmem:[%s133 + $0x48] sm:$0xf]
    %v153 = vld [vmem:[%s133 + $0x4c] sm:$0xf]
    %v154 = vld [vmem:[%s133 + $0x50] sm:$0xf]
    %v155 = vld [vmem:[%s133 + $0x54] sm:$0xf]
    %v156 = vld [vmem:[%s133 + $0x58] sm:$0xf]
    %v157 = vld [vmem:[%s133 + $0x5c] sm:$0xf]
    %v158 = vld [vmem:[%s133 + $0x60] sm:$0xf]
    %v159 = vld [vmem:[%s133 + $0x64] sm:$0xf]
    %v160 = vld [vmem:[%s133 + $0x68] sm:$0xf]
    %v161 = vld [vmem:[%s133 + $0x6c] sm:$0xf]
    %v162 = vld [vmem:[%s133 + $0x70] sm:$0xf]
    %v163 = vld [vmem:[%s133 + $0x74] sm:$0xf]
    %v164 = vld [vmem:[%s133 + $0x78] sm:$0xf]
    %v165 = vld [vmem:[%s133 + $0x7c] sm:$0xf]
    %v166 = vld [vmem:[#allocation2] sm:$0xff]
    %v167 = vld [vmem:[#allocation2 + $0x8] sm:$0xff]
    %v168 = vld [vmem:[#allocation2 + $0x10] sm:$0xff]
    %v169 = vld [vmem:[#allocation2 + $0x18] sm:$0xff]
    %v170 = vld [vmem:[#allocation2 + $0x20] sm:$0xff]
    %v171 = vld [vmem:[#allocation2 + $0x28] sm:$0xff]
    %v172 = vld [vmem:[#allocation2 + $0x30] sm:$0xff]
    %v173 = vld [vmem:[#allocation2 + $0x38] sm:$0xff]
    %v174 = vld [vmem:[#allocation2 + $0x40] sm:$0xff]
    %v175 = vld [vmem:[#allocation2 + $0x48] sm:$0xff]
    %v176 = vld [vmem:[#allocation2 + $0x50] sm:$0xff]
    %v177 = vld [vmem:[#allocation2 + $0x58] sm:$0xff]
    %v178 = vld [vmem:[#allocation2 + $0x60] sm:$0xff]
    %v179 = vld [vmem:[#allocation2 + $0x68] sm:$0xff]
    %v180 = vld [vmem:[#allocation2 + $0x70] sm:$0xff]
    %v181 = vld [vmem:[#allocation2 + $0x78] sm:$0xff]
    %v182 = vld [vmem:[#allocation2 + $0x80] sm:$0xff]
    %v183 = vld [vmem:[#allocation2 + $0x88] sm:$0xff]
    %v184 = vld [vmem:[#allocation2 + $0x90] sm:$0xff]
    %v185 = vld [vmem:[#allocation2 + $0x98] sm:$0xff]
    %v186 = vld [vmem:[#allocation2 + $0xa0] sm:$0xff]
    %v187 = vld [vmem:[#allocation2 + $0xa8] sm:$0xff]
    %v188 = vld [vmem:[#allocation2 + $0xb0] sm:$0xff]
    %v189 = vld [vmem:[#allocation2 + $0xb8] sm:$0xff]
    %v190 = vld [vmem:[#allocation2 + $0xc0] sm:$0xff]
    %v191 = vld [vmem:[#allocation2 + $0xc8] sm:$0xff]
    %v192 = vld [vmem:[#allocation2 + $0xd0] sm:$0xff]
    %v193 = vld [vmem:[#allocation2 + $0xd8] sm:$0xff]
    %v194 = vld [vmem:[#allocation2 + $0xe0] sm:$0xff]
    %v195 = vld [vmem:[#allocation2 + $0xe8] sm:$0xff]
    %v196 = vld [vmem:[#allocation2 + $0xf0] sm:$0xff]
    %v197 = vld [vmem:[#allocation2 + $0xf8] sm:$0xff]
    %v198 = vld [vmem:[#allocation3] sm:$0xff]
    %v199 = vld [vmem:[#allocation3 + $0x8] sm:$0xff]
    %v200 = vld [vmem:[#allocation3 + $0x10] sm:$0xff]
    %v201 = vld [vmem:[#allocation3 + $0x18] sm:$0xff]
    %v202 = vld [vmem:[#allocation3 + $0x20] sm:$0xff]
    %v203 = vld [vmem:[#allocation3 + $0x28] sm:$0xff]
    %v204 = vld [vmem:[#allocation3 + $0x30] sm:$0xff]
    %v205 = vld [vmem:[#allocation3 + $0x38] sm:$0xff]
    %v206 = vld [vmem:[#allocation3 + $0x40] sm:$0xff]
    %v207 = vld [vmem:[#allocation3 + $0x48] sm:$0xff]
    %v208 = vld [vmem:[#allocation3 + $0x50] sm:$0xff]
    %v209 = vld [vmem:[#allocation3 + $0x58] sm:$0xff]
    %v210 = vld [vmem:[#allocation3 + $0x60] sm:$0xff]
    %v211 = vld [vmem:[#allocation3 + $0x68] sm:$0xff]
    %v212 = vld [vmem:[#allocation3 + $0x70] sm:$0xff]
    %v213 = vld [vmem:[#allocation3 + $0x78] sm:$0xff]
    %v214 = vld [vmem:[#allocation3 + $0x80] sm:$0xff]
    %v215 = vld [vmem:[#allocation3 + $0x88] sm:$0xff]
    %v216 = vld [vmem:[#allocation3 + $0x90] sm:$0xff]
    %v217 = vld [vmem:[#allocation3 + $0x98] sm:$0xff]
    %v218 = vld [vmem:[#allocation3 + $0xa0] sm:$0xff]
    %v219 = vld [vmem:[#allocation3 + $0xa8] sm:$0xff]
    %v220 = vld [vmem:[#allocation3 + $0xb0] sm:$0xff]
    %v221 = vld [vmem:[#allocation3 + $0xb8] sm:$0xff]
    %v222 = vld [vmem:[#allocation3 + $0xc0] sm:$0xff]
    %v223 = vld [vmem:[#allocation3 + $0xc8] sm:$0xff]
    %v224 = vld [vmem:[#allocation3 + $0xd0] sm:$0xff]
    %v225 = vld [vmem:[#allocation3 + $0xd8] sm:$0xff]
    %v226 = vld [vmem:[#allocation3 + $0xe0] sm:$0xff]
    %v227 = vld [vmem:[#allocation3 + $0xe8] sm:$0xff]
    %v228 = vld [vmem:[#allocation3 + $0xf0] sm:$0xff]
    %v229 = vld [vmem:[#allocation3 + $0xf8] sm:$0xff]
    %v262 = vunpack.c.l.b16 %v198
    %v263 = vunpack.c.h.b16 %v198
    %v264 = vunpack.c.l.b16 %v199
    %v265 = vunpack.c.h.b16 %v199
    %v266 = vunpack.c.l.b16 %v200
    %v267 = vunpack.c.h.b16 %v200
    %v268 = vunpack.c.l.b16 %v201
    %v269 = vunpack.c.h.b16 %v201
    %v270 = vunpack.c.l.b16 %v202
    %v271 = vunpack.c.h.b16 %v202
    %v272 = vunpack.c.l.b16 %v203
    %v273 = vunpack.c.h.b16 %v203
    %v274 = vunpack.c.l.b16 %v204
    %v275 = vunpack.c.h.b16 %v204
    %v276 = vunpack.c.l.b16 %v205
    %v277 = vunpack.c.h.b16 %v205
    %v278 = vunpack.c.l.b16 %v206
    %v279 = vunpack.c.h.b16 %v206
    %v280 = vunpack.c.l.b16 %v207
    %v281 = vunpack.c.h.b16 %v207
    %v282 = vunpack.c.l.b16 %v208
    %v283 = vunpack.c.h.b16 %v208
    %v284 = vunpack.c.l.b16 %v209
    %v285 = vunpack.c.h.b16 %v209
    %v286 = vunpack.c.l.b16 %v210
    %v287 = vunpack.c.h.b16 %v210
    %v288 = vunpack.c.l.b16 %v211
    %v289 = vunpack.c.h.b16 %v211
    %v290 = vunpack.c.l.b16 %v212
    %v291 = vunpack.c.h.b16 %v212
    %v292 = vunpack.c.l.b16 %v213
    %v293 = vunpack.c.h.b16 %v213
    %v294 = vunpack.c.l.b16 %v214
    %v295 = vunpack.c.h.b16 %v214
    %v296 = vunpack.c.l.b16 %v215
    %v297 = vunpack.c.h.b16 %v215
    %v298 = vunpack.c.l.b16 %v216
    %v299 = vunpack.c.h.b16 %v216
    %v300 = vunpack.c.l.b16 %v217
    %v301 = vunpack.c.h.b16 %v217
    %v302 = vunpack.c.l.b16 %v218
    %v303 = vunpack.c.h.b16 %v218
    %v304 = vunpack.c.l.b16 %v219
    %v305 = vunpack.c.h.b16 %v219
    %v306 = vunpack.c.l.b16 %v220
    %v307 = vunpack.c.h.b16 %v220
    %v308 = vunpack.c.l.b16 %v221
    %v309 = vunpack.c.h.b16 %v221
    %v310 = vunpack.c.l.b16 %v222
    %v311 = vunpack.c.h.b16 %v222
    %v312 = vunpack.c.l.b16 %v223
    %v313 = vunpack.c.h.b16 %v223
    %v314 = vunpack.c.l.b16 %v224
    %v315 = vunpack.c.h.b16 %v224
    %v316 = vunpack.c.l.b16 %v225
    %v317 = vunpack.c.h.b16 %v225
    %v318 = vunpack.c.l.b16 %v226
    %v319 = vunpack.c.h.b16 %v226
    %v320 = vunpack.c.l.b16 %v227
    %v321 = vunpack.c.h.b16 %v227
    %v322 = vunpack.c.l.b16 %v228
    %v323 = vunpack.c.h.b16 %v228
    %v324 = vunpack.c.l.b16 %v229
    %v325 = vunpack.c.h.b16 %v229
    %v326 = vpack.c.b16 %v264, %v262
    %v327 = vpack.c.b16 %v265, %v263
    %v328 = vpack.c.b16 %v268, %v266
    %v329 = vpack.c.b16 %v269, %v267
    %v330 = vpack.c.b16 %v272, %v270
    %v331 = vpack.c.b16 %v273, %v271
    %v332 = vpack.c.b16 %v276, %v274
    %v333 = vpack.c.b16 %v277, %v275
    %v334 = vpack.c.b16 %v280, %v278
    %v335 = vpack.c.b16 %v281, %v279
    %v336 = vpack.c.b16 %v284, %v282
    %v337 = vpack.c.b16 %v285, %v283
    %v338 = vpack.c.b16 %v288, %v286
    %v339 = vpack.c.b16 %v289, %v287
    %v340 = vpack.c.b16 %v292, %v290
    %v341 = vpack.c.b16 %v293, %v291
    %v342 = vpack.c.b16 %v296, %v294
    %v343 = vpack.c.b16 %v297, %v295
    %v344 = vpack.c.b16 %v300, %v298
    %v345 = vpack.c.b16 %v301, %v299
    %v346 = vpack.c.b16 %v304, %v302
    %v347 = vpack.c.b16 %v305, %v303
    %v348 = vpack.c.b16 %v308, %v306
    %v349 = vpack.c.b16 %v309, %v307
    %v350 = vpack.c.b16 %v312, %v310
    %v351 = vpack.c.b16 %v313, %v311
    %v352 = vpack.c.b16 %v316, %v314
    %v353 = vpack.c.b16 %v317, %v315
    %v354 = vpack.c.b16 %v320, %v318
    %v355 = vpack.c.b16 %v321, %v319
    %v356 = vpack.c.b16 %v324, %v322
    %v357 = vpack.c.b16 %v325, %v323
    %v422 = vunpack.c.l.b16 %v134
    %v423 = vunpack.c.l.b16 %v135
    %v424 = vunpack.c.l.b16 %v136
    %v425 = vunpack.c.l.b16 %v137
    %v426 = vunpack.c.l.b16 %v138
    %v427 = vunpack.c.l.b16 %v139
    %v428 = vunpack.c.l.b16 %v140
    %v429 = vunpack.c.l.b16 %v141
    %v430 = vunpack.c.l.b16 %v142
    %v431 = vunpack.c.l.b16 %v143
    %v432 = vunpack.c.l.b16 %v144
    %v433 = vunpack.c.l.b16 %v145
    %v434 = vunpack.c.l.b16 %v146
    %v435 = vunpack.c.l.b16 %v147
    %v436 = vunpack.c.l.b16 %v148
    %v437 = vunpack.c.l.b16 %v149
    %v438 = vunpack.c.l.b16 %v150
    %v439 = vunpack.c.l.b16 %v151
    %v440 = vunpack.c.l.b16 %v152
    %v441 = vunpack.c.l.b16 %v153
    %v442 = vunpack.c.l.b16 %v154
    %v443 = vunpack.c.l.b16 %v155
    %v444 = vunpack.c.l.b16 %v156
    %v445 = vunpack.c.l.b16 %v157
    %v446 = vunpack.c.l.b16 %v158
    %v447 = vunpack.c.l.b16 %v159
    %v448 = vunpack.c.l.b16 %v160
    %v449 = vunpack.c.l.b16 %v161
    %v450 = vunpack.c.l.b16 %v162
    %v451 = vunpack.c.l.b16 %v163
    %v452 = vunpack.c.l.b16 %v164
    %v453 = vunpack.c.l.b16 %v165
    %v454 = vpack.c.b16 %v423, %v422
    %v455 = vpack.c.b16 %v425, %v424
    %v456 = vpack.c.b16 %v427, %v426
    %v457 = vpack.c.b16 %v429, %v428
    %v458 = vpack.c.b16 %v431, %v430
    %v459 = vpack.c.b16 %v433, %v432
    %v460 = vpack.c.b16 %v435, %v434
    %v461 = vpack.c.b16 %v437, %v436
    %v462 = vpack.c.b16 %v439, %v438
    %v463 = vpack.c.b16 %v441, %v440
    %v464 = vpack.c.b16 %v443, %v442
    %v465 = vpack.c.b16 %v445, %v444
    %v466 = vpack.c.b16 %v447, %v446
    %v467 = vpack.c.b16 %v449, %v448
    %v468 = vpack.c.b16 %v451, %v450
    %v469 = vpack.c.b16 %v453, %v452
    %486 = vmatprep.subr.bf16.mxu0 0
    %487 = vmatpush1.bf16.msra.mxu0 %v454
    %488 = vmatprep.subr.bf16.mxu0 0
    %489 = vmatpush1.bf16.msra.mxu0 %v455
    %490 = vmatprep.subr.bf16.mxu0 0
    %491 = vmatpush1.bf16.msra.mxu0 %v456
    %492 = vmatprep.subr.bf16.mxu0 0
    %493 = vmatpush1.bf16.msra.mxu0 %v457
    %494 = vmatprep.subr.bf16.mxu0 0
    %495 = vmatpush1.bf16.msra.mxu0 %v458
    %496 = vmatprep.subr.bf16.mxu0 0
    %497 = vmatpush1.bf16.msra.mxu0 %v459
    %498 = vmatprep.subr.bf16.mxu0 0
    %499 = vmatpush1.bf16.msra.mxu0 %v460
    %500 = vmatprep.subr.bf16.mxu0 0
    %501 = vmatpush1.bf16.msra.mxu0 %v461
    %502 = vmatprep.subr.bf16.mxu0 0
    %503 = vmatpush1.bf16.msra.mxu0 %v462
    %504 = vmatprep.subr.bf16.mxu0 0
    %505 = vmatpush1.bf16.msra.mxu0 %v463
    %506 = vmatprep.subr.bf16.mxu0 0
    %507 = vmatpush1.bf16.msra.mxu0 %v464
    %508 = vmatprep.subr.bf16.mxu0 0
    %509 = vmatpush1.bf16.msra.mxu0 %v465
    %510 = vmatprep.subr.bf16.mxu0 0
    %511 = vmatpush1.bf16.msra.mxu0 %v466
    %512 = vmatprep.subr.bf16.mxu0 0
    %513 = vmatpush1.bf16.msra.mxu0 %v467
    %514 = vmatprep.subr.bf16.mxu0 0
    %515 = vmatpush1.bf16.msra.mxu0 %v468
    %516 = vmatprep.subr.bf16.mxu0 0
    %517 = vmatpush1.bf16.msra.mxu0 %v469
    %518 = vmatprep.mubr.bf16.mxu0 %v327
    %519 = vmatmul.mubr.bf16.gmra.mrb[0].mxu0 %v326
    %v520 = vpop.f32.mrb[0].mxu0
    %v521 = vadd.f32 0.0, %v520
    %v522 = vpop.f32.mrb[0].mxu0
    %v523 = vpop.f32.mrb[0].mxu0
    %v524 = vadd.f32 0.0, %v523
    %v525 = vpop.f32.mrb[0].mxu0
    %526 = vmatprep.mubr.bf16.mxu0 %v329
    %527 = vmatmul.mubr.bf16.gmra.mrb[0].mxu0 %v328
    %v528 = vpop.f32.mrb[0].mxu0
    %v529 = vadd.f32 0.0, %v528
    %v530 = vpop.f32.mrb[0].mxu0
    %v531 = vpop.f32.mrb[0].mxu0
    %v532 = vadd.f32 0.0, %v531
    %v533 = vpop.f32.mrb[0].mxu0
    %534 = vmatprep.mubr.bf16.mxu0 %v331
    %535 = vmatmul.mubr.bf16.gmra.mrb[0].mxu0 %v330
    %v536 = vpop.f32.mrb[0].mxu0
    %v537 = vadd.f32 0.0, %v536
    %v538 = vpop.f32.mrb[0].mxu0
    %v539 = vpop.f32.mrb[0].mxu0
    %v540 = vadd.f32 0.0, %v539
    %v541 = vpop.f32.mrb[0].mxu0
    %542 = vmatprep.mubr.bf16.mxu0 %v333
    %543 = vmatmul.mubr.bf16.gmra.mrb[0].mxu0 %v332
    %v544 = vpop.f32.mrb[0].mxu0
    %v545 = vadd.f32 0.0, %v544
    %v546 = vpop.f32.mrb[0].mxu0
    %v547 = vpop.f32.mrb[0].mxu0
    %v548 = vadd.f32 0.0, %v547
    %v549 = vpop.f32.mrb[0].mxu0
    %550 = vmatprep.mubr.bf16.mxu0 %v335
    %551 = vmatmul.mubr.bf16.gmra.mrb[0].mxu0 %v334
    %v552 = vpop.f32.mrb[0].mxu0
    %v553 = vadd.f32 0.0, %v552
    %v554 = vpop.f32.mrb[0].mxu0
    %v555 = vpop.f32.mrb[0].mxu0
    %v556 = vadd.f32 0.0, %v555
    %v557 = vpop.f32.mrb[0].mxu0
    %558 = vmatprep.mubr.bf16.mxu0 %v337
    %559 = vmatmul.mubr.bf16.gmra.mrb[0].mxu0 %v336
    %v560 = vpop.f32.mrb[0].mxu0
    %v561 = vadd.f32 0.0, %v560
    %v562 = vpop.f32.mrb[0].mxu0
    %v563 = vpop.f32.mrb[0].mxu0
    %v564 = vadd.f32 0.0, %v563
    %v565 = vpop.f32.mrb[0].mxu0
    %566 = vmatprep.mubr.bf16.mxu0 %v339
    %567 = vmatmul.mubr.bf16.gmra.mrb[0].mxu0 %v338
    %v568 = vpop.f32.mrb[0].mxu0
    %v569 = vadd.f32 0.0, %v568
    %v570 = vpop.f32.mrb[0].mxu0
    %v571 = vpop.f32.mrb[0].mxu0
    %v572 = vadd.f32 0.0, %v571
    %v573 = vpop.f32.mrb[0].mxu0
    %574 = vmatprep.mubr.bf16.mxu0 %v341
    %575 = vmatmul.mubr.bf16.gmra.mrb[0].mxu0 %v340
    %v576 = vpop.f32.mrb[0].mxu0
    %v577 = vadd.f32 0.0, %v576
    %v578 = vpop.f32.mrb[0].mxu0
    %v579 = vpop.f32.mrb[0].mxu0
    %v580 = vadd.f32 0.0, %v579
    %v581 = vpop.f32.mrb[0].mxu0
    %582 = vmatprep.mubr.bf16.mxu0 %v343
    %583 = vmatmul.mubr.bf16.gmra.mrb[0].mxu0 %v342
    %v584 = vpop.f32.mrb[0].mxu0
    %v585 = vadd.f32 0.0, %v584
    %v586 = vpop.f32.mrb[0].mxu0
    %v587 = vpop.f32.mrb[0].mxu0
    %v588 = vadd.f32 0.0, %v587
    %v589 = vpop.f32.mrb[0].mxu0
    %590 = vmatprep.mubr.bf16.mxu0 %v345
    %591 = vmatmul.mubr.bf16.gmra.mrb[0].mxu0 %v344
    %v592 = vpop.f32.mrb[0].mxu0
    %v593 = vadd.f32 0.0, %v592
    %v594 = vpop.f32.mrb[0].mxu0
    %v595 = vpop.f32.mrb[0].mxu0
    %v596 = vadd.f32 0.0, %v595
    %v597 = vpop.f32.mrb[0].mxu0
    %598 = vmatprep.mubr.bf16.mxu0 %v347
    %599 = vmatmul.mubr.bf16.gmra.mrb[0].mxu0 %v346
    %v600 = vpop.f32.mrb[0].mxu0
    %v601 = vadd.f32 0.0, %v600
    %v602 = vpop.f32.mrb[0].mxu0
    %v603 = vpop.f32.mrb[0].mxu0
    %v604 = vadd.f32 0.0, %v603
    %v605 = vpop.f32.mrb[0].mxu0
    %606 = vmatprep.mubr.bf16.mxu0 %v349
    %607 = vmatmul.mubr.bf16.gmra.mrb[0].mxu0 %v348
    %v608 = vpop.f32.mrb[0].mxu0
    %v609 = vadd.f32 0.0, %v608
    %v610 = vpop.f32.mrb[0].mxu0
    %v611 = vpop.f32.mrb[0].mxu0
    %v612 = vadd.f32 0.0, %v611
    %v613 = vpop.f32.mrb[0].mxu0
    %614 = vmatprep.mubr.bf16.mxu0 %v351
    %615 = vmatmul.mubr.bf16.gmra.mrb[0].mxu0 %v350
    %v616 = vpop.f32.mrb[0].mxu0
    %v617 = vadd.f32 0.0, %v616
    %v618 = vpop.f32.mrb[0].mxu0
    %v619 = vpop.f32.mrb[0].mxu0
    %v620 = vadd.f32 0.0, %v619
    %v621 = vpop.f32.mrb[0].mxu0
    %622 = vmatprep.mubr.bf16.mxu0 %v353
    %623 = vmatmul.mubr.bf16.gmra.mrb[0].mxu0 %v352
    %v624 = vpop.f32.mrb[0].mxu0
    %v625 = vadd.f32 0.0, %v624
    %v626 = vpop.f32.mrb[0].mxu0
    %v627 = vpop.f32.mrb[0].mxu0
    %v628 = vadd.f32 0.0, %v627
    %v629 = vpop.f32.mrb[0].mxu0
    %630 = vmatprep.mubr.bf16.mxu0 %v355
    %631 = vmatmul.mubr.bf16.gmra.mrb[0].mxu0 %v354
    %v632 = vpop.f32.mrb[0].mxu0
    %v633 = vadd.f32 0.0, %v632
    %v634 = vpop.f32.mrb[0].mxu0
    %v635 = vpop.f32.mrb[0].mxu0
    %v636 = vadd.f32 0.0, %v635
    %v637 = vpop.f32.mrb[0].mxu0
    %638 = vmatprep.mubr.bf16.mxu0 %v357
    %639 = vmatmul.mubr.bf16.gmra.mrb[0].mxu0 %v356
    %v640 = vpop.f32.mrb[0].mxu0
    %v641 = vadd.f32 0.0, %v640
    %v642 = vpop.f32.mrb[0].mxu0
    %v643 = vpop.f32.mrb[0].mxu0
    %v644 = vadd.f32 0.0, %v643
    %v645 = vpop.f32.mrb[0].mxu0
    %646 = vdwg.mxu0
    %v647 = vadd.f32 %v166, %v521
    %v648 = vadd.f32 %v167, %v524
    %v649 = vadd.f32 %v168, %v529
    %v650 = vadd.f32 %v169, %v532
    %v651 = vadd.f32 %v170, %v537
    %v652 = vadd.f32 %v171, %v540
    %v653 = vadd.f32 %v172, %v545
    %v654 = vadd.f32 %v173, %v548
    %v655 = vadd.f32 %v174, %v553
    %v656 = vadd.f32 %v175, %v556
    %v657 = vadd.f32 %v176, %v561
    %v658 = vadd.f32 %v177, %v564
    %v659 = vadd.f32 %v178, %v569
    %v660 = vadd.f32 %v179, %v572
    %v661 = vadd.f32 %v180, %v577
    %v662 = vadd.f32 %v181, %v580
    %v663 = vadd.f32 %v182, %v585
    %v664 = vadd.f32 %v183, %v588
    %v665 = vadd.f32 %v184, %v593
    %v666 = vadd.f32 %v185, %v596
    %v667 = vadd.f32 %v186, %v601
    %v668 = vadd.f32 %v187, %v604
    %v669 = vadd.f32 %v188, %v609
    %v670 = vadd.f32 %v189, %v612
    %v671 = vadd.f32 %v190, %v617
    %v672 = vadd.f32 %v191, %v620
    %v673 = vadd.f32 %v192, %v625
    %v674 = vadd.f32 %v193, %v628
    %v675 = vadd.f32 %v194, %v633
    %v676 = vadd.f32 %v195, %v636
    %v677 = vadd.f32 %v196, %v641
    %v678 = vadd.f32 %v197, %v644
    %679 = vst [vmem:[#allocation2] sm:$0xff] %v647
    %680 = vst [vmem:[#allocation2 + $0x8] sm:$0xff] %v648
    %681 = vst [vmem:[#allocation2 + $0x10] sm:$0xff] %v649
    %682 = vst [vmem:[#allocation2 + $0x18] sm:$0xff] %v650
    %683 = vst [vmem:[#allocation2 + $0x20] sm:$0xff] %v651
    %684 = vst [vmem:[#allocation2 + $0x28] sm:$0xff] %v652
    %685 = vst [vmem:[#allocation2 + $0x30] sm:$0xff] %v653
    %686 = vst [vmem:[#allocation2 + $0x38] sm:$0xff] %v654
    %687 = vst [vmem:[#allocation2 + $0x40] sm:$0xff] %v655
    %688 = vst [vmem:[#allocation2 + $0x48] sm:$0xff] %v656
    %689 = vst [vmem:[#allocation2 + $0x50] sm:$0xff] %v657
    %690 = vst [vmem:[#allocation2 + $0x58] sm:$0xff] %v658
    %691 = vst [vmem:[#allocation2 + $0x60] sm:$0xff] %v659
    %692 = vst [vmem:[#allocation2 + $0x68] sm:$0xff] %v660
    %693 = vst [vmem:[#allocation2 + $0x70] sm:$0xff] %v661
    %694 = vst [vmem:[#allocation2 + $0x78] sm:$0xff] %v662
    %695 = vst [vmem:[#allocation2 + $0x80] sm:$0xff] %v663
    %696 = vst [vmem:[#allocation2 + $0x88] sm:$0xff] %v664
    %697 = vst [vmem:[#allocation2 + $0x90] sm:$0xff] %v665
    %698 = vst [vmem:[#allocation2 + $0x98] sm:$0xff] %v666
    %699 = vst [vmem:[#allocation2 + $0xa0] sm:$0xff] %v667
    %700 = vst [vmem:[#allocation2 + $0xa8] sm:$0xff] %v668
    %701 = vst [vmem:[#allocation2 + $0xb0] sm:$0xff] %v669
    %702 = vst [vmem:[#allocation2 + $0xb8] sm:$0xff] %v670
    %703 = vst [vmem:[#allocation2 + $0xc0] sm:$0xff] %v671
    %704 = vst [vmem:[#allocation2 + $0xc8] sm:$0xff] %v672
    %705 = vst [vmem:[#allocation2 + $0xd0] sm:$0xff] %v673
    %706 = vst [vmem:[#allocation2 + $0xd8] sm:$0xff] %v674
    %707 = vst [vmem:[#allocation2 + $0xe0] sm:$0xff] %v675
    %708 = vst [vmem:[#allocation2 + $0xe8] sm:$0xff] %v676
    %709 = vst [vmem:[#allocation2 + $0xf0] sm:$0xff] %v677
    %710 = vst [vmem:[#allocation2 + $0xf8] sm:$0xff] %v678
    // Predicated region
    $region50: #{tpu_custom_call.1} parent=1 // pred_check
      %p711 = pneg %p93
    $region51: #{tpu_custom_call.1} parent=1 // pred_check_branch
      %713 = sbr.rel (%p711) target = $region53
    $region52: #{tpu_custom_call.1} parent=1 // pred_region
      %v714 = vld [vmem:[#allocation2] sm:$0xff]
      %v715 = vld [vmem:[#allocation2 + $0x8] sm:$0xff]
      %v716 = vld [vmem:[#allocation2 + $0x10] sm:$0xff]
      %v717 = vld [vmem:[#allocation2 + $0x18] sm:$0xff]
      %v718 = vld [vmem:[#allocation2 + $0x20] sm:$0xff]
      %v719 = vld [vmem:[#allocation2 + $0x28] sm:$0xff]
      %v720 = vld [vmem:[#allocation2 + $0x30] sm:$0xff]
      %v721 = vld [vmem:[#allocation2 + $0x38] sm:$0xff]
      %v722 = vld [vmem:[#allocation2 + $0x40] sm:$0xff]
      %v723 = vld [vmem:[#allocation2 + $0x48] sm:$0xff]
      %v724 = vld [vmem:[#allocation2 + $0x50] sm:$0xff]
      %v725 = vld [vmem:[#allocation2 + $0x58] sm:$0xff]
      %v726 = vld [vmem:[#allocation2 + $0x60] sm:$0xff]
      %v727 = vld [vmem:[#allocation2 + $0x68] sm:$0xff]
      %v728 = vld [vmem:[#allocation2 + $0x70] sm:$0xff]
      %v729 = vld [vmem:[#allocation2 + $0x78] sm:$0xff]
      %v730 = vld [vmem:[#allocation2 + $0x80] sm:$0xff]
      %v731 = vld [vmem:[#allocation2 + $0x88] sm:$0xff]
      %v732 = vld [vmem:[#allocation2 + $0x90] sm:$0xff]
      %v733 = vld [vmem:[#allocation2 + $0x98] sm:$0xff]
      %v734 = vld [vmem:[#allocation2 + $0xa0] sm:$0xff]
      %v735 = vld [vmem:[#allocation2 + $0xa8] sm:$0xff]
      %v736 = vld [vmem:[#allocation2 + $0xb0] sm:$0xff]
      %v737 = vld [vmem:[#allocation2 + $0xb8] sm:$0xff]
      %v738 = vld [vmem:[#allocation2 + $0xc0] sm:$0xff]
      %v739 = vld [vmem:[#allocation2 + $0xc8] sm:$0xff]
      %v740 = vld [vmem:[#allocation2 + $0xd0] sm:$0xff]
      %v741 = vld [vmem:[#allocation2 + $0xd8] sm:$0xff]
      %v742 = vld [vmem:[#allocation2 + $0xe0] sm:$0xff]
      %v743 = vld [vmem:[#allocation2 + $0xe8] sm:$0xff]
      %v744 = vld [vmem:[#allocation2 + $0xf0] sm:$0xff]
      %v745 = vld [vmem:[#allocation2 + $0xf8] sm:$0xff]
      %v746 = vpack.c.bf16 %v715, %v714
      %v747 = vpack.c.bf16 %v717, %v716
      %v748 = vpack.c.bf16 %v719, %v718
      %v749 = vpack.c.bf16 %v721, %v720
      %v750 = vpack.c.bf16 %v723, %v722
      %v751 = vpack.c.bf16 %v725, %v724
      %v752 = vpack.c.bf16 %v727, %v726
      %v753 = vpack.c.bf16 %v729, %v728
      %v754 = vpack.c.bf16 %v731, %v730
      %v755 = vpack.c.bf16 %v733, %v732
      %v756 = vpack.c.bf16 %v735, %v734
      %v757 = vpack.c.bf16 %v737, %v736
      %v758 = vpack.c.bf16 %v739, %v738
      %v759 = vpack.c.bf16 %v741, %v740
      %v760 = vpack.c.bf16 %v743, %v742
      %v761 = vpack.c.bf16 %v745, %v744
      %v762 = vld [vmem:[#allocation8] sm:$0xf]
      %v763 = vld [vmem:[#allocation8 + $0x4] sm:$0xf]
      %v764 = vld [vmem:[#allocation8 + $0x8] sm:$0xf]
      %v765 = vld [vmem:[#allocation8 + $0xc] sm:$0xf]
      %v766 = vld [vmem:[#allocation8 + $0x10] sm:$0xf]
      %v767 = vld [vmem:[#allocation8 + $0x14] sm:$0xf]
      %v768 = vld [vmem:[#allocation8 + $0x18] sm:$0xf]
      %v769 = vld [vmem:[#allocation8 + $0x1c] sm:$0xf]
      %v770 = vld [vmem:[#allocation8 + $0x20] sm:$0xf]
      %v771 = vld [vmem:[#allocation8 + $0x24] sm:$0xf]
      %v772 = vld [vmem:[#allocation8 + $0x28] sm:$0xf]
      %v773 = vld [vmem:[#allocation8 + $0x2c] sm:$0xf]
      %v774 = vld [vmem:[#allocation8 + $0x30] sm:$0xf]
      %v775 = vld [vmem:[#allocation8 + $0x34] sm:$0xf]
      %v776 = vld [vmem:[#allocation8 + $0x38] sm:$0xf]
      %v777 = vld [vmem:[#allocation8 + $0x3c] sm:$0xf]
      %v778 = vld [vmem:[%s3] sm:$0x1]
      %v780 = vlaneseq
      %v781 = vshrl.u32 %v780, 7
      %v782 = vsub.s32 0, %v781
      %v783 = vrot.slane %v778, %v782
      %v801 = vunpack.c.l.b16 %v762
      %v802 = vunpack.c.l.b16 %v763
      %v803 = vunpack.c.l.b16 %v764
      %v804 = vunpack.c.l.b16 %v765
      %v805 = vunpack.c.l.b16 %v766
      %v806 = vunpack.c.l.b16 %v767
      %v807 = vunpack.c.l.b16 %v768
      %v808 = vunpack.c.l.b16 %v769
      %v809 = vunpack.c.l.b16 %v770
      %v810 = vunpack.c.l.b16 %v771
      %v811 = vunpack.c.l.b16 %v772
      %v812 = vunpack.c.l.b16 %v773
      %v813 = vunpack.c.l.b16 %v774
      %v814 = vunpack.c.l.b16 %v775
      %v815 = vunpack.c.l.b16 %v776
      %v816 = vunpack.c.l.b16 %v777
      %v817 = vpack.c.b16 %v802, %v801
      %v818 = vpack.c.b16 %v804, %v803
      %v819 = vpack.c.b16 %v806, %v805
      %v820 = vpack.c.b16 %v808, %v807
      %v821 = vpack.c.b16 %v810, %v809
      %v822 = vpack.c.b16 %v812, %v811
      %v823 = vpack.c.b16 %v814, %v813
      %v824 = vpack.c.b16 %v816, %v815
      %833 = vmatprep.subr.bf16.mxu0 0
      %834 = vmatpush1.bf16.msra.mxu0 %v817
      %835 = vmatprep.subr.bf16.mxu0 0
      %836 = vmatpush1.bf16.msra.mxu0 %v818
      %837 = vmatprep.subr.bf16.mxu0 0
      %838 = vmatpush1.bf16.msra.mxu0 %v819
      %839 = vmatprep.subr.bf16.mxu0 0
      %840 = vmatpush1.bf16.msra.mxu0 %v820
      %841 = vmatprep.subr.bf16.mxu0 0
      %842 = vmatpush1.bf16.msra.mxu0 %v821
      %843 = vmatprep.subr.bf16.mxu0 0
      %844 = vmatpush1.bf16.msra.mxu0 %v822
      %845 = vmatprep.subr.bf16.mxu0 0
      %846 = vmatpush1.bf16.msra.mxu0 %v823
      %847 = vmatprep.subr.bf16.mxu0 0
      %848 = vmatpush1.bf16.msra.mxu0 %v824
      %849 = vmatprep.subr.bf16.mxu0 0
      %850 = vmatpush1.bf16.msra.mxu0 0
      %851 = vmatprep.subr.bf16.mxu0 0
      %852 = vmatpush1.bf16.msra.mxu0 0
      %853 = vmatprep.subr.bf16.mxu0 0
      %854 = vmatpush1.bf16.msra.mxu0 0
      %855 = vmatprep.subr.bf16.mxu0 0
      %856 = vmatpush1.bf16.msra.mxu0 0
      %857 = vmatprep.subr.bf16.mxu0 0
      %858 = vmatpush1.bf16.msra.mxu0 0
      %859 = vmatprep.subr.bf16.mxu0 0
      %860 = vmatpush1.bf16.msra.mxu0 0
      %861 = vmatprep.subr.bf16.mxu0 0
      %862 = vmatpush1.bf16.msra.mxu0 0
      %863 = vmatprep.subr.bf16.mxu0 0
      %864 = vmatpush1.bf16.msra.mxu0 0
      %865 = vmatprep.mubr.bf16.mxu0 0
      %866 = vmatmul.mubr.bf16.gmra.mrb[0].mxu0 %v746
      %v867 = vpop.f32.mrb[0].mxu0
      %v868 = vadd.f32 %v783, %v867
      %v869 = vpop.f32.mrb[0].mxu0
      %v870 = vpop.f32.mrb[0].mxu0
      %v871 = vadd.f32 %v783, %v870
      %v872 = vpop.f32.mrb[0].mxu0
      %873 = vmatprep.mubr.bf16.mxu0 0
      %874 = vmatmul.mubr.bf16.gmra.mrb[0].mxu0 %v747
      %v875 = vpop.f32.mrb[0].mxu0
      %v876 = vadd.f32 %v783, %v875
      %v877 = vpop.f32.mrb[0].mxu0
      %v878 = vpop.f32.mrb[0].mxu0
      %v879 = vadd.f32 %v783, %v878
      %v880 = vpop.f32.mrb[0].mxu0
      %881 = vmatprep.mubr.bf16.mxu0 0
      %882 = vmatmul.mubr.bf16.gmra.mrb[0].mxu0 %v748
      %v883 = vpop.f32.mrb[0].mxu0
      %v884 = vadd.f32 %v783, %v883
      %v885 = vpop.f32.mrb[0].mxu0
      %v886 = vpop.f32.mrb[0].mxu0
      %v887 = vadd.f32 %v783, %v886
      %v888 = vpop.f32.mrb[0].mxu0
      %889 = vmatprep.mubr.bf16.mxu0 0
      %890 = vmatmul.mubr.bf16.gmra.mrb[0].mxu0 %v749
      %v891 = vpop.f32.mrb[0].mxu0
      %v892 = vadd.f32 %v783, %v891
      %v893 = vpop.f32.mrb[0].mxu0
      %v894 = vpop.f32.mrb[0].mxu0
      %v895 = vadd.f32 %v783, %v894
      %v896 = vpop.f32.mrb[0].mxu0
      %897 = vmatprep.mubr.bf16.mxu0 0
      %898 = vmatmul.mubr.bf16.gmra.mrb[0].mxu0 %v750
      %v899 = vpop.f32.mrb[0].mxu0
      %v900 = vadd.f32 %v783, %v899
      %v901 = vpop.f32.mrb[0].mxu0
      %v902 = vpop.f32.mrb[0].mxu0
      %v903 = vadd.f32 %v783, %v902
      %v904 = vpop.f32.mrb[0].mxu0
      %905 = vmatprep.mubr.bf16.mxu0 0
      %906 = vmatmul.mubr.bf16.gmra.mrb[0].mxu0 %v751
      %v907 = vpop.f32.mrb[0].mxu0
      %v908 = vadd.f32 %v783, %v907
      %v909 = vpop.f32.mrb[0].mxu0
      %v910 = vpop.f32.mrb[0].mxu0
      %v911 = vadd.f32 %v783, %v910
      %v912 = vpop.f32.mrb[0].mxu0
      %913 = vmatprep.mubr.bf16.mxu0 0
      %914 = vmatmul.mubr.bf16.gmra.mrb[0].mxu0 %v752
      %v915 = vpop.f32.mrb[0].mxu0
      %v916 = vadd.f32 %v783, %v915
      %v917 = vpop.f32.mrb[0].mxu0
      %v918 = vpop.f32.mrb[0].mxu0
      %v919 = vadd.f32 %v783, %v918
      %v920 = vpop.f32.mrb[0].mxu0
      %921 = vmatprep.mubr.bf16.mxu0 0
      %922 = vmatmul.mubr.bf16.gmra.mrb[0].mxu0 %v753
      %v923 = vpop.f32.mrb[0].mxu0
      %v924 = vadd.f32 %v783, %v923
      %v925 = vpop.f32.mrb[0].mxu0
      %v926 = vpop.f32.mrb[0].mxu0
      %v927 = vadd.f32 %v783, %v926
      %v928 = vpop.f32.mrb[0].mxu0
      %929 = vmatprep.mubr.bf16.mxu0 0
      %930 = vmatmul.mubr.bf16.gmra.mrb[0].mxu0 %v754
      %v931 = vpop.f32.mrb[0].mxu0
      %v932 = vadd.f32 %v783, %v931
      %v933 = vpop.f32.mrb[0].mxu0
      %v934 = vpop.f32.mrb[0].mxu0
      %v935 = vadd.f32 %v783, %v934
      %v936 = vpop.f32.mrb[0].mxu0
      %937 = vmatprep.mubr.bf16.mxu0 0
      %938 = vmatmul.mubr.bf16.gmra.mrb[0].mxu0 %v755
      %v939 = vpop.f32.mrb[0].mxu0
      %v940 = vadd.f32 %v783, %v939
      %v941 = vpop.f32.mrb[0].mxu0
      %v942 = vpop.f32.mrb[0].mxu0
      %v943 = vadd.f32 %v783, %v942
      %v944 = vpop.f32.mrb[0].mxu0
      %945 = vmatprep.mubr.bf16.mxu0 0
      %946 = vmatmul.mubr.bf16.gmra.mrb[0].mxu0 %v756
      %v947 = vpop.f32.mrb[0].mxu0
      %v948 = vadd.f32 %v783, %v947
      %v949 = vpop.f32.mrb[0].mxu0
      %v950 = vpop.f32.mrb[0].mxu0
      %v951 = vadd.f32 %v783, %v950
      %v952 = vpop.f32.mrb[0].mxu0
      %953 = vmatprep.mubr.bf16.mxu0 0
      %954 = vmatmul.mubr.bf16.gmra.mrb[0].mxu0 %v757
      %v955 = vpop.f32.mrb[0].mxu0
      %v956 = vadd.f32 %v783, %v955
      %v957 = vpop.f32.mrb[0].mxu0
      %v958 = vpop.f32.mrb[0].mxu0
      %v959 = vadd.f32 %v783, %v958
      %v960 = vpop.f32.mrb[0].mxu0
      %961 = vmatprep.mubr.bf16.mxu0 0
      %962 = vmatmul.mubr.bf16.gmra.mrb[0].mxu0 %v758
      %v963 = vpop.f32.mrb[0].mxu0
      %v964 = vadd.f32 %v783, %v963
      %v965 = vpop.f32.mrb[0].mxu0
      %v966 = vpop.f32.mrb[0].mxu0
      %v967 = vadd.f32 %v783, %v966
      %v968 = vpop.f32.mrb[0].mxu0
      %969 = vmatprep.mubr.bf16.mxu0 0
      %970 = vmatmul.mubr.bf16.gmra.mrb[0].mxu0 %v759
      %v971 = vpop.f32.mrb[0].mxu0
      %v972 = vadd.f32 %v783, %v971
      %v973 = vpop.f32.mrb[0].mxu0
      %v974 = vpop.f32.mrb[0].mxu0
      %v975 = vadd.f32 %v783, %v974
      %v976 = vpop.f32.mrb[0].mxu0
      %977 = vmatprep.mubr.bf16.mxu0 0
      %978 = vmatmul.mubr.bf16.gmra.mrb[0].mxu0 %v760
      %v979 = vpop.f32.mrb[0].mxu0
      %v980 = vadd.f32 %v783, %v979
      %v981 = vpop.f32.mrb[0].mxu0
      %v982 = vpop.f32.mrb[0].mxu0
      %v983 = vadd.f32 %v783, %v982
      %v984 = vpop.f32.mrb[0].mxu0
      %985 = vmatprep.mubr.bf16.mxu0 0
      %986 = vmatmul.mubr.bf16.gmra.mrb[0].mxu0 %v761
      %v987 = vpop.f32.mrb[0].mxu0
      %v988 = vadd.f32 %v783, %v987
      %v989 = vpop.f32.mrb[0].mxu0
      %v990 = vpop.f32.mrb[0].mxu0
      %v991 = vadd.f32 %v783, %v990
      %v992 = vpop.f32.mrb[0].mxu0
      %993 = vdwg.mxu0
      %v994 = vmax.f32 %v868, 0.0
      %v995 = vmax.f32 %v871, 0.0
      %v996 = vmax.f32 %v876, 0.0
      %v997 = vmax.f32 %v879, 0.0
      %v998 = vmax.f32 %v884, 0.0
      %v999 = vmax.f32 %v887, 0.0
      %v1000 = vmax.f32 %v892, 0.0
      %v1001 = vmax.f32 %v895, 0.0
      %v1002 = vmax.f32 %v900, 0.0
      %v1003 = vmax.f32 %v903, 0.0
      %v1004 = vmax.f32 %v908, 0.0
      %v1005 = vmax.f32 %v911, 0.0
      %v1006 = vmax.f32 %v916, 0.0
      %v1007 = vmax.f32 %v919, 0.0
      %v1008 = vmax.f32 %v924, 0.0
      %v1009 = vmax.f32 %v927, 0.0
      %v1010 = vmax.f32 %v932, 0.0
      %v1011 = vmax.f32 %v935, 0.0
      %v1012 = vmax.f32 %v940, 0.0
      %v1013 = vmax.f32 %v943, 0.0
      %v1014 = vmax.f32 %v948, 0.0
      %v1015 = vmax.f32 %v951, 0.0
      %v1016 = vmax.f32 %v956, 0.0
      %v1017 = vmax.f32 %v959, 0.0
      %v1018 = vmax.f32 %v964, 0.0
      %v1019 = vmax.f32 %v967, 0.0
      %v1020 = vmax.f32 %v972, 0.0
      %v1021 = vmax.f32 %v975, 0.0
      %v1022 = vmax.f32 %v980, 0.0
      %v1023 = vmax.f32 %v983, 0.0
      %v1024 = vmax.f32 %v988, 0.0
      %v1025 = vmax.f32 %v991, 0.0
      %v1026 = vld [vmem:[#allocation11] sm:$0xf]
      %v1027 = vld [vmem:[#allocation11 + $0x4] sm:$0xf]
      %v1028 = vld [vmem:[#allocation11 + $0x8] sm:$0xf]
      %v1029 = vld [vmem:[#allocation11 + $0xc] sm:$0xf]
      %v1030 = vld [vmem:[#allocation11 + $0x10] sm:$0xf]
      %v1031 = vld [vmem:[#allocation11 + $0x14] sm:$0xf]
      %v1032 = vld [vmem:[#allocation11 + $0x18] sm:$0xf]
      %v1033 = vld [vmem:[#allocation11 + $0x1c] sm:$0xf]
      %v1034 = vld [vmem:[#allocation11 + $0x20] sm:$0xf]
      %v1035 = vld [vmem:[#allocation11 + $0x24] sm:$0xf]
      %v1036 = vld [vmem:[#allocation11 + $0x28] sm:$0xf]
      %v1037 = vld [vmem:[#allocation11 + $0x2c] sm:$0xf]
      %v1038 = vld [vmem:[#allocation11 + $0x30] sm:$0xf]
      %v1039 = vld [vmem:[#allocation11 + $0x34] sm:$0xf]
      %v1040 = vld [vmem:[#allocation11 + $0x38] sm:$0xf]
      %v1041 = vld [vmem:[#allocation11 + $0x3c] sm:$0xf]
      %v1042 = vld [vmem:[#allocation11 + $0x40] sm:$0xf]
      %v1043 = vld [vmem:[#allocation11 + $0x44] sm:$0xf]
      %v1044 = vld [vmem:[#allocation11 + $0x48] sm:$0xf]
      %v1045 = vld [vmem:[#allocation11 + $0x4c] sm:$0xf]
      %v1046 = vld [vmem:[#allocation11 + $0x50] sm:$0xf]
      %v1047 = vld [vmem:[#allocation11 + $0x54] sm:$0xf]
      %v1048 = vld [vmem:[#allocation11 + $0x58] sm:$0xf]
      %v1049 = vld [vmem:[#allocation11 + $0x5c] sm:$0xf]
      %v1050 = vld [vmem:[#allocation11 + $0x60] sm:$0xf]
      %v1051 = vld [vmem:[#allocation11 + $0x64] sm:$0xf]
      %v1052 = vld [vmem:[#allocation11 + $0x68] sm:$0xf]
      %v1053 = vld [vmem:[#allocation11 + $0x6c] sm:$0xf]
      %v1054 = vld [vmem:[#allocation11 + $0x70] sm:$0xf]
      %v1055 = vld [vmem:[#allocation11 + $0x74] sm:$0xf]
      %v1056 = vld [vmem:[#allocation11 + $0x78] sm:$0xf]
      %v1057 = vld [vmem:[#allocation11 + $0x7c] sm:$0xf]
      %v1058 = vunpack.c.l.bf16 %v1026
      %v1059 = vunpack.c.l.bf16 %v1027
      %v1060 = vunpack.c.l.bf16 %v1028
      %v1061 = vunpack.c.l.bf16 %v1029
      %v1062 = vunpack.c.l.bf16 %v1030
      %v1063 = vunpack.c.l.bf16 %v1031
      %v1064 = vunpack.c.l.bf16 %v1032
      %v1065 = vunpack.c.l.bf16 %v1033
      %v1066 = vunpack.c.l.bf16 %v1034
      %v1067 = vunpack.c.l.bf16 %v1035
      %v1068 = vunpack.c.l.bf16 %v1036
      %v1069 = vunpack.c.l.bf16 %v1037
      %v1070 = vunpack.c.l.bf16 %v1038
      %v1071 = vunpack.c.l.bf16 %v1039
      %v1072 = vunpack.c.l.bf16 %v1040
      %v1073 = vunpack.c.l.bf16 %v1041
      %v1074 = vunpack.c.l.bf16 %v1042
      %v1075 = vunpack.c.l.bf16 %v1043
      %v1076 = vunpack.c.l.bf16 %v1044
      %v1077 = vunpack.c.l.bf16 %v1045
      %v1078 = vunpack.c.l.bf16 %v1046
      %v1079 = vunpack.c.l.bf16 %v1047
      %v1080 = vunpack.c.l.bf16 %v1048
      %v1081 = vunpack.c.l.bf16 %v1049
      %v1082 = vunpack.c.l.bf16 %v1050
      %v1083 = vunpack.c.l.bf16 %v1051
      %v1084 = vunpack.c.l.bf16 %v1052
      %v1085 = vunpack.c.l.bf16 %v1053
      %v1086 = vunpack.c.l.bf16 %v1054
      %v1087 = vunpack.c.l.bf16 %v1055
      %v1088 = vunpack.c.l.bf16 %v1056
      %v1089 = vunpack.c.l.bf16 %v1057
      %v1090 = vmul.f32 %v994, %v1058
      %v1091 = vmul.f32 %v995, %v1059
      %v1092 = vmul.f32 %v996, %v1060
      %v1093 = vmul.f32 %v997, %v1061
      %v1094 = vmul.f32 %v998, %v1062
      %v1095 = vmul.f32 %v999, %v1063
      %v1096 = vmul.f32 %v1000, %v1064
      %v1097 = vmul.f32 %v1001, %v1065
      %v1098 = vmul.f32 %v1002, %v1066
      %v1099 = vmul.f32 %v1003, %v1067
      %v1100 = vmul.f32 %v1004, %v1068
      %v1101 = vmul.f32 %v1005, %v1069
      %v1102 = vmul.f32 %v1006, %v1070
      %v1103 = vmul.f32 %v1007, %v1071
      %v1104 = vmul.f32 %v1008, %v1072
      %v1105 = vmul.f32 %v1009, %v1073
      %v1106 = vmul.f32 %v1010, %v1074
      %v1107 = vmul.f32 %v1011, %v1075
      %v1108 = vmul.f32 %v1012, %v1076
      %v1109 = vmul.f32 %v1013, %v1077
      %v1110 = vmul.f32 %v1014, %v1078
      %v1111 = vmul.f32 %v1015, %v1079
      %v1112 = vmul.f32 %v1016, %v1080
      %v1113 = vmul.f32 %v1017, %v1081
      %v1114 = vmul.f32 %v1018, %v1082
      %v1115 = vmul.f32 %v1019, %v1083
      %v1116 = vmul.f32 %v1020, %v1084
      %v1117 = vmul.f32 %v1021, %v1085
      %v1118 = vmul.f32 %v1022, %v1086
      %v1119 = vmul.f32 %v1023, %v1087
      %v1120 = vmul.f32 %v1024, %v1088
      %v1121 = vmul.f32 %v1025, %v1089
      %v1122 = vpack.c.bf16 %v1091, %v1090
      %v1123 = vpack.c.bf16 %v1093, %v1092
      %v1124 = vpack.c.bf16 %v1095, %v1094
      %v1125 = vpack.c.bf16 %v1097, %v1096
      %v1126 = vpack.c.bf16 %v1099, %v1098
      %v1127 = vpack.c.bf16 %v1101, %v1100
      %v1128 = vpack.c.bf16 %v1103, %v1102
      %v1129 = vpack.c.bf16 %v1105, %v1104
      %v1130 = vpack.c.bf16 %v1107, %v1106
      %v1131 = vpack.c.bf16 %v1109, %v1108
      %v1132 = vpack.c.bf16 %v1111, %v1110
      %v1133 = vpack.c.bf16 %v1113, %v1112
      %v1134 = vpack.c.bf16 %v1115, %v1114
      %v1135 = vpack.c.bf16 %v1117, %v1116
      %v1136 = vpack.c.bf16 %v1119, %v1118
      %v1137 = vpack.c.bf16 %v1121, %v1120
      %v1138 = vld [vmem:[#allocation9] sm:$0xf]
      %v1139 = vld [vmem:[#allocation9 + $0x4] sm:$0xf]
      %v1140 = vld [vmem:[#allocation9 + $0x8] sm:$0xf]
      %v1141 = vld [vmem:[#allocation9 + $0xc] sm:$0xf]
      %v1142 = vld [vmem:[#allocation9 + $0x10] sm:$0xf]
      %v1143 = vld [vmem:[#allocation9 + $0x14] sm:$0xf]
      %v1144 = vld [vmem:[#allocation9 + $0x18] sm:$0xf]
      %v1145 = vld [vmem:[#allocation9 + $0x1c] sm:$0xf]
      %v1146 = vld [vmem:[#allocation9 + $0x20] sm:$0xf]
      %v1147 = vld [vmem:[#allocation9 + $0x24] sm:$0xf]
      %v1148 = vld [vmem:[#allocation9 + $0x28] sm:$0xf]
      %v1149 = vld [vmem:[#allocation9 + $0x2c] sm:$0xf]
      %v1150 = vld [vmem:[#allocation9 + $0x30] sm:$0xf]
      %v1151 = vld [vmem:[#allocation9 + $0x34] sm:$0xf]
      %v1152 = vld [vmem:[#allocation9 + $0x38] sm:$0xf]
      %v1153 = vld [vmem:[#allocation9 + $0x3c] sm:$0xf]
      %v1170 = vunpack.c.l.b16 %v1138
      %v1171 = vunpack.c.l.b16 %v1139
      %v1172 = vunpack.c.l.b16 %v1140
      %v1173 = vunpack.c.l.b16 %v1141
      %v1174 = vunpack.c.l.b16 %v1142
      %v1175 = vunpack.c.l.b16 %v1143
      %v1176 = vunpack.c.l.b16 %v1144
      %v1177 = vunpack.c.l.b16 %v1145
      %v1178 = vunpack.c.l.b16 %v1146
      %v1179 = vunpack.c.l.b16 %v1147
      %v1180 = vunpack.c.l.b16 %v1148
      %v1181 = vunpack.c.l.b16 %v1149
      %v1182 = vunpack.c.l.b16 %v1150
      %v1183 = vunpack.c.l.b16 %v1151
      %v1184 = vunpack.c.l.b16 %v1152
      %v1185 = vunpack.c.l.b16 %v1153
      %v1186 = vpack.c.b16 %v1171, %v1170
      %v1187 = vpack.c.b16 %v1173, %v1172
      %v1188 = vpack.c.b16 %v1175, %v1174
      %v1189 = vpack.c.b16 %v1177, %v1176
      %v1190 = vpack.c.b16 %v1179, %v1178
      %v1191 = vpack.c.b16 %v1181, %v1180
      %v1192 = vpack.c.b16 %v1183, %v1182
      %v1193 = vpack.c.b16 %v1185, %v1184
      %1202 = vmatprep.subr.bf16.mxu0 0
      %1203 = vmatpush1.bf16.msra.mxu0 %v1186
      %1204 = vmatprep.subr.bf16.mxu0 0
      %1205 = vmatpush1.bf16.msra.mxu0 %v1187
      %1206 = vmatprep.subr.bf16.mxu0 0
      %1207 = vmatpush1.bf16.msra.mxu0 %v1188
      %1208 = vmatprep.subr.bf16.mxu0 0
      %1209 = vmatpush1.bf16.msra.mxu0 %v1189
      %1210 = vmatprep.subr.bf16.mxu0 0
      %1211 = vmatpush1.bf16.msra.mxu0 %v1190
      %1212 = vmatprep.subr.bf16.mxu0 0
      %1213 = vmatpush1.bf16.msra.mxu0 %v1191
      %1214 = vmatprep.subr.bf16.mxu0 0
      %1215 = vmatpush1.bf16.msra.mxu0 %v1192
      %1216 = vmatprep.subr.bf16.mxu0 0
      %1217 = vmatpush1.bf16.msra.mxu0 %v1193
      %1218 = vmatprep.subr.bf16.mxu0 0
      %1219 = vmatpush1.bf16.msra.mxu0 0
      %1220 = vmatprep.subr.bf16.mxu0 0
      %1221 = vmatpush1.bf16.msra.mxu0 0
      %1222 = vmatprep.subr.bf16.mxu0 0
      %1223 = vmatpush1.bf16.msra.mxu0 0
      %1224 = vmatprep.subr.bf16.mxu0 0
      %1225 = vmatpush1.bf16.msra.mxu0 0
      %1226 = vmatprep.subr.bf16.mxu0 0
      %1227 = vmatpush1.bf16.msra.mxu0 0
      %1228 = vmatprep.subr.bf16.mxu0 0
      %1229 = vmatpush1.bf16.msra.mxu0 0
      %1230 = vmatprep.subr.bf16.mxu0 0
      %1231 = vmatpush1.bf16.msra.mxu0 0
      %1232 = vmatprep.subr.bf16.mxu0 0
      %1233 = vmatpush1.bf16.msra.mxu0 0
      %1234 = vmatprep.mubr.bf16.mxu0 0
      %1235 = vmatmul.mubr.bf16.gmra.mrb[0].mxu0 %v1122
      %v1236 = vpop.f32.mrb[0].mxu0
      %v1237 = vadd.f32 0.0, %v1236
      %v1238 = vpop.f32.mrb[0].mxu0
      %v1239 = vpop.f32.mrb[0].mxu0
      %v1240 = vadd.f32 0.0, %v1239
      %v1241 = vpop.f32.mrb[0].mxu0
      %1242 = vmatprep.mubr.bf16.mxu0 0
      %1243 = vmatmul.mubr.bf16.gmra.mrb[0].mxu0 %v1123
      %v1244 = vpop.f32.mrb[0].mxu0
      %v1245 = vadd.f32 0.0, %v1244
      %v1246 = vpop.f32.mrb[0].mxu0
      %v1247 = vpop.f32.mrb[0].mxu0
      %v1248 = vadd.f32 0.0, %v1247
      %v1249 = vpop.f32.mrb[0].mxu0
      %1250 = vmatprep.mubr.bf16.mxu0 0
      %1251 = vmatmul.mubr.bf16.gmra.mrb[0].mxu0 %v1124
      %v1252 = vpop.f32.mrb[0].mxu0
      %v1253 = vadd.f32 0.0, %v1252
      %v1254 = vpop.f32.mrb[0].mxu0
      %v1255 = vpop.f32.mrb[0].mxu0
      %v1256 = vadd.f32 0.0, %v1255
      %v1257 = vpop.f32.mrb[0].mxu0
      %1258 = vmatprep.mubr.bf16.mxu0 0
      %1259 = vmatmul.mubr.bf16.gmra.mrb[0].mxu0 %v1125
      %v1260 = vpop.f32.mrb[0].mxu0
      %v1261 = vadd.f32 0.0, %v1260
      %v1262 = vpop.f32.mrb[0].mxu0
      %v1263 = vpop.f32.mrb[0].mxu0
      %v1264 = vadd.f32 0.0, %v1263
      %v1265 = vpop.f32.mrb[0].mxu0
      %1266 = vmatprep.mubr.bf16.mxu0 0
      %1267 = vmatmul.mubr.bf16.gmra.mrb[0].mxu0 %v1126
      %v1268 = vpop.f32.mrb[0].mxu0
      %v1269 = vadd.f32 0.0, %v1268
      %v1270 = vpop.f32.mrb[0].mxu0
      %v1271 = vpop.f32.mrb[0].mxu0
      %v1272 = vadd.f32 0.0, %v1271
      %v1273 = vpop.f32.mrb[0].mxu0
      %1274 = vmatprep.mubr.bf16.mxu0 0
      %1275 = vmatmul.mubr.bf16.gmra.mrb[0].mxu0 %v1127
      %v1276 = vpop.f32.mrb[0].mxu0
      %v1277 = vadd.f32 0.0, %v1276
      %v1278 = vpop.f32.mrb[0].mxu0
      %v1279 = vpop.f32.mrb[0].mxu0
      %v1280 = vadd.f32 0.0, %v1279
      %v1281 = vpop.f32.mrb[0].mxu0
      %1282 = vmatprep.mubr.bf16.mxu0 0
      %1283 = vmatmul.mubr.bf16.gmra.mrb[0].mxu0 %v1128
      %v1284 = vpop.f32.mrb[0].mxu0
      %v1285 = vadd.f32 0.0, %v1284
      %v1286 = vpop.f32.mrb[0].mxu0
      %v1287 = vpop.f32.mrb[0].mxu0
      %v1288 = vadd.f32 0.0, %v1287
      %v1289 = vpop.f32.mrb[0].mxu0
      %1290 = vmatprep.mubr.bf16.mxu0 0
      %1291 = vmatmul.mubr.bf16.gmra.mrb[0].mxu0 %v1129
      %v1292 = vpop.f32.mrb[0].mxu0
      %v1293 = vadd.f32 0.0, %v1292
      %v1294 = vpop.f32.mrb[0].mxu0
      %v1295 = vpop.f32.mrb[0].mxu0
      %v1296 = vadd.f32 0.0, %v1295
      %v1297 = vpop.f32.mrb[0].mxu0
      %1298 = vmatprep.mubr.bf16.mxu0 0
      %1299 = vmatmul.mubr.bf16.gmra.mrb[0].mxu0 %v1130
      %v1300 = vpop.f32.mrb[0].mxu0
      %v1301 = vadd.f32 0.0, %v1300
      %v1302 = vpop.f32.mrb[0].mxu0
      %v1303 = vpop.f32.mrb[0].mxu0
      %v1304 = vadd.f32 0.0, %v1303
      %v1305 = vpop.f32.mrb[0].mxu0
      %1306 = vmatprep.mubr.bf16.mxu0 0
      %1307 = vmatmul.mubr.bf16.gmra.mrb[0].mxu0 %v1131
      %v1308 = vpop.f32.mrb[0].mxu0
      %v1309 = vadd.f32 0.0, %v1308
      %v1310 = vpop.f32.mrb[0].mxu0
      %v1311 = vpop.f32.mrb[0].mxu0
      %v1312 = vadd.f32 0.0, %v1311
      %v1313 = vpop.f32.mrb[0].mxu0
      %1314 = vmatprep.mubr.bf16.mxu0 0
      %1315 = vmatmul.mubr.bf16.gmra.mrb[0].mxu0 %v1132
      %v1316 = vpop.f32.mrb[0].mxu0
      %v1317 = vadd.f32 0.0, %v1316
      %v1318 = vpop.f32.mrb[0].mxu0
      %v1319 = vpop.f32.mrb[0].mxu0
      %v1320 = vadd.f32 0.0, %v1319
      %v1321 = vpop.f32.mrb[0].mxu0
      %1322 = vmatprep.mubr.bf16.mxu0 0
      %1323 = vmatmul.mubr.bf16.gmra.mrb[0].mxu0 %v1133
      %v1324 = vpop.f32.mrb[0].mxu0
      %v1325 = vadd.f32 0.0, %v1324
      %v1326 = vpop.f32.mrb[0].mxu0
      %v1327 = vpop.f32.mrb[0].mxu0
      %v1328 = vadd.f32 0.0, %v1327
      %v1329 = vpop.f32.mrb[0].mxu0
      %1330 = vmatprep.mubr.bf16.mxu0 0
      %1331 = vmatmul.mubr.bf16.gmra.mrb[0].mxu0 %v1134
      %v1332 = vpop.f32.mrb[0].mxu0
      %v1333 = vadd.f32 0.0, %v1332
      %v1334 = vpop.f32.mrb[0].mxu0
      %v1335 = vpop.f32.mrb[0].mxu0
      %v1336 = vadd.f32 0.0, %v1335
      %v1337 = vpop.f32.mrb[0].mxu0
      %1338 = vmatprep.mubr.bf16.mxu0 0
      %1339 = vmatmul.mubr.bf16.gmra.mrb[0].mxu0 %v1135
      %v1340 = vpop.f32.mrb[0].mxu0
      %v1341 = vadd.f32 0.0, %v1340
      %v1342 = vpop.f32.mrb[0].mxu0
      %v1343 = vpop.f32.mrb[0].mxu0
      %v1344 = vadd.f32 0.0, %v1343
      %v1345 = vpop.f32.mrb[0].mxu0
      %1346 = vmatprep.mubr.bf16.mxu0 0
      %1347 = vmatmul.mubr.bf16.gmra.mrb[0].mxu0 %v1136
      %v1348 = vpop.f32.mrb[0].mxu0
      %v1349 = vadd.f32 0.0, %v1348
      %v1350 = vpop.f32.mrb[0].mxu0
      %v1351 = vpop.f32.mrb[0].mxu0
      %v1352 = vadd.f32 0.0, %v1351
      %v1353 = vpop.f32.mrb[0].mxu0
      %1354 = vmatprep.mubr.bf16.mxu0 0
      %1355 = vmatmul.mubr.bf16.gmra.mrb[0].mxu0 %v1137
      %v1356 = vpop.f32.mrb[0].mxu0
      %v1357 = vadd.f32 0.0, %v1356
      %v1358 = vpop.f32.mrb[0].mxu0
      %v1359 = vpop.f32.mrb[0].mxu0
      %v1360 = vadd.f32 0.0, %v1359
      %v1361 = vpop.f32.mrb[0].mxu0
      %1362 = vdwg.mxu0
      %v1363 = vpack.c.bf16 %v1240, %v1237
      %v1364 = vpack.c.bf16 %v1248, %v1245
      %v1365 = vpack.c.bf16 %v1256, %v1253
      %v1366 = vpack.c.bf16 %v1264, %v1261
      %v1367 = vpack.c.bf16 %v1272, %v1269
      %v1368 = vpack.c.bf16 %v1280, %v1277
      %v1369 = vpack.c.bf16 %v1288, %v1285
      %v1370 = vpack.c.bf16 %v1296, %v1293
      %v1371 = vpack.c.bf16 %v1304, %v1301
      %v1372 = vpack.c.bf16 %v1312, %v1309
      %v1373 = vpack.c.bf16 %v1320, %v1317
      %v1374 = vpack.c.bf16 %v1328, %v1325
      %v1375 = vpack.c.bf16 %v1336, %v1333
      %v1376 = vpack.c.bf16 %v1344, %v1341
      %v1377 = vpack.c.bf16 %v1352, %v1349
      %v1378 = vpack.c.bf16 %v1360, %v1357
      %v1395 = vunpack.c.l.b16 %v1363
      %v1396 = vunpack.c.h.b16 %v1363
      %v1397 = vunpack.c.l.b16 %v1364
      %v1398 = vunpack.c.h.b16 %v1364
      %v1399 = vunpack.c.l.b16 %v1365
      %v1400 = vunpack.c.h.b16 %v1365
      %v1401 = vunpack.c.l.b16 %v1366
      %v1402 = vunpack.c.h.b16 %v1366
      %v1403 = vunpack.c.l.b16 %v1367
      %v1404 = vunpack.c.h.b16 %v1367
      %v1405 = vunpack.c.l.b16 %v1368
      %v1406 = vunpack.c.h.b16 %v1368
      %v1407 = vunpack.c.l.b16 %v1369
      %v1408 = vunpack.c.h.b16 %v1369
      %v1409 = vunpack.c.l.b16 %v1370
      %v1410 = vunpack.c.h.b16 %v1370
      %v1411 = vunpack.c.l.b16 %v1371
      %v1412 = vunpack.c.h.b16 %v1371
      %v1413 = vunpack.c.l.b16 %v1372
      %v1414 = vunpack.c.h.b16 %v1372
      %v1415 = vunpack.c.l.b16 %v1373
      %v1416 = vunpack.c.h.b16 %v1373
      %v1417 = vunpack.c.l.b16 %v1374
      %v1418 = vunpack.c.h.b16 %v1374
      %v1419 = vunpack.c.l.b16 %v1375
      %v1420 = vunpack.c.h.b16 %v1375
      %v1421 = vunpack.c.l.b16 %v1376
      %v1422 = vunpack.c.h.b16 %v1376
      %v1423 = vunpack.c.l.b16 %v1377
      %v1424 = vunpack.c.h.b16 %v1377
      %v1425 = vunpack.c.l.b16 %v1378
      %v1426 = vunpack.c.h.b16 %v1378
      %v1427 = vpack.c.b16 %v1395, %v1395
      %v1428 = vpack.c.b16 %v1396, %v1396
      %v1429 = vpack.c.b16 %v1397, %v1397
      %v1430 = vpack.c.b16 %v1398, %v1398
      %v1431 = vpack.c.b16 %v1399, %v1399
      %v1432 = vpack.c.b16 %v1400, %v1400
      %v1433 = vpack.c.b16 %v1401, %v1401
      %v1434 = vpack.c.b16 %v1402, %v1402
      %v1435 = vpack.c.b16 %v1403, %v1403
      %v1436 = vpack.c.b16 %v1404, %v1404
      %v1437 = vpack.c.b16 %v1405, %v1405
      %v1438 = vpack.c.b16 %v1406, %v1406
      %v1439 = vpack.c.b16 %v1407, %v1407
      %v1440 = vpack.c.b16 %v1408, %v1408
      %v1441 = vpack.c.b16 %v1409, %v1409
      %v1442 = vpack.c.b16 %v1410, %v1410
      %v1443 = vpack.c.b16 %v1411, %v1411
      %v1444 = vpack.c.b16 %v1412, %v1412
      %v1445 = vpack.c.b16 %v1413, %v1413
      %v1446 = vpack.c.b16 %v1414, %v1414
      %v1447 = vpack.c.b16 %v1415, %v1415
      %v1448 = vpack.c.b16 %v1416, %v1416
      %v1449 = vpack.c.b16 %v1417, %v1417
      %v1450 = vpack.c.b16 %v1418, %v1418
      %v1451 = vpack.c.b16 %v1419, %v1419
      %v1452 = vpack.c.b16 %v1420, %v1420
      %v1453 = vpack.c.b16 %v1421, %v1421
      %v1454 = vpack.c.b16 %v1422, %v1422
      %v1455 = vpack.c.b16 %v1423, %v1423
      %v1456 = vpack.c.b16 %v1424, %v1424
      %v1457 = vpack.c.b16 %v1425, %v1425
      %v1458 = vpack.c.b16 %v1426, %v1426
      %1491 = vst [vmem:[#allocation12] sm:$0xf] %v1427
      %1492 = vst [vmem:[#allocation12 + $0x4] sm:$0xf] %v1428
      %1493 = vst [vmem:[#allocation12 + $0x8] sm:$0xf] %v1429
      %1494 = vst [vmem:[#allocation12 + $0xc] sm:$0xf] %v1430
      %1495 = vst [vmem:[#allocation12 + $0x10] sm:$0xf] %v1431
      %1496 = vst [vmem:[#allocation12 + $0x14] sm:$0xf] %v1432
      %1497 = vst [vmem:[#allocation12 + $0x18] sm:$0xf] %v1433
      %1498 = vst [vmem:[#allocation12 + $0x1c] sm:$0xf] %v1434
      %1499 = vst [vmem:[#allocation12 + $0x20] sm:$0xf] %v1435
      %1500 = vst [vmem:[#allocation12 + $0x24] sm:$0xf] %v1436
      %1501 = vst [vmem:[#allocation12 + $0x28] sm:$0xf] %v1437
      %1502 = vst [vmem:[#allocation12 + $0x2c] sm:$0xf] %v1438
      %1503 = vst [vmem:[#allocation12 + $0x30] sm:$0xf] %v1439
      %1504 = vst [vmem:[#allocation12 + $0x34] sm:$0xf] %v1440
      %1505 = vst [vmem:[#allocation12 + $0x38] sm:$0xf] %v1441
      %1506 = vst [vmem:[#allocation12 + $0x3c] sm:$0xf] %v1442
      %1507 = vst [vmem:[#allocation12 + $0x40] sm:$0xf] %v1443
      %1508 = vst [vmem:[#allocation12 + $0x44] sm:$0xf] %v1444
      %1509 = vst [vmem:[#allocation12 + $0x48] sm:$0xf] %v1445
      %1510 = vst [vmem:[#allocation12 + $0x4c] sm:$0xf] %v1446
      %1511 = vst [vmem:[#allocation12 + $0x50] sm:$0xf] %v1447
      %1512 = vst [vmem:[#allocation12 + $0x54] sm:$0xf] %v1448
      %1513 = vst [vmem:[#allocation12 + $0x58] sm:$0xf] %v1449
      %1514 = vst [vmem:[#allocation12 + $0x5c] sm:$0xf] %v1450
      %1515 = vst [vmem:[#allocation12 + $0x60] sm:$0xf] %v1451
      %1516 = vst [vmem:[#allocation12 + $0x64] sm:$0xf] %v1452
      %1517 = vst [vmem:[#allocation12 + $0x68] sm:$0xf] %v1453
      %1518 = vst [vmem:[#allocation12 + $0x6c] sm:$0xf] %v1454
      %1519 = vst [vmem:[#allocation12 + $0x70] sm:$0xf] %v1455
      %1520 = vst [vmem:[#allocation12 + $0x74] sm:$0xf] %v1456
      %1521 = vst [vmem:[#allocation12 + $0x78] sm:$0xf] %v1457
      %1522 = vst [vmem:[#allocation12 + $0x7c] sm:$0xf] %v1458
    $region53: #{tpu_custom_call.1} parent=1 // pred_fallthru
      _
    // Predicated region
    $region54: #{tpu_custom_call.1} parent=1 // pred_check
      _
    $region55: #{tpu_custom_call.1} parent=1 // pred_check_branch
      %1524 = sbr.rel (0) target = $region57
    $region56: #{tpu_custom_call.1} parent=1 // pred_region
      %s1526 = ssub.s32 2048, 2048
      %1527 = vsyncadd [#allocation5], %s1526
      %s1528 = sshll.u32 [#allocation12], 4
      %s1529 = int_to_ptr.vmem [resolvable:$true] %s1528
      %1534 = dma.vmem_to_hbm [thread:$0]  %s1529, 2048, %s6, [#allocation5], 64, 64, 4
    $region57: #{tpu_custom_call.1} parent=1 // pred_fallthru
      _
    // Predicated region
    $region58: #{tpu_custom_call.1} parent=1 // pred_check
      _
    $region59: #{tpu_custom_call.1} parent=1 // pred_check_branch
      %1536 = sbr.rel (0) target = $region61
    $region60: #{tpu_custom_call.1} parent=1 // pred_region
      %1537 = dma.done [#allocation5], 2048
    $region61: #{tpu_custom_call.1} parent=1 // pred_fallthru
      _
    %1538 = vsyncpa [#allocation4], 1
    %1539 = vsyncpa [#allocation7], 1
    %1540 = vsyncpa [#allocation10], 1
    %1541 = vsyncpa [#allocation5], 1

</llo_original>
